<compile_context>
chip_gen: v6e
topology: v6e:2x2x1
jax: 0.10.0
libtpu: 0.0.40
codegen_flags: <defaults>
</compile_context>

<pallas_src>
import functools

import jax
import jax.numpy as jnp
from jax.experimental import pallas as pl
from jax.experimental.pallas import tpu as pltpu

LEAKY_SLOPE = 0.01  # torch.nn.LeakyReLU default negative_slope


def _round_up(x: int, m: int) -> int:
    return (x + m - 1) // m * m


def _leaky_relu(x):
    return jnp.where(x >= 0, x, LEAKY_SLOPE * x)


def make_neumf_kernel(num_mlp_layers: int):
    """Build a NeuMF kernel for a fixed number of MLP layers.

    Ref order (PrefetchScalarGridSpec):
      uid_ref, iid_ref        SMEM (B_pad,) int32            scalar prefetch
      u_tbl, i_tbl            HBM (N+1, E) uint32 packed      memory_space=ANY
      w0p, w0q, b0            first MLP layer, split over (p_mlp, q_mlp)
      (w_k, b_k) ...          remaining MLP layers
      wg, wm                  head rows (1, E) / (1, H_last)  f32
      out_ref                 VMEM (1, TILE_B) f32
      u_buf, v_buf            VMEM (TILE_B, E) uint32         gather buffers
      sems                    DMA semaphores (2,)
    """

    def kernel(*refs):
        it = iter(refs)
        uid_ref, iid_ref = next(it), next(it)
        u_tbl, i_tbl = next(it), next(it)
        w0p, w0q, b0 = next(it), next(it), next(it)
        hidden = [(next(it), next(it)) for _ in range(num_mlp_layers - 1)]
        wg, wm = next(it), next(it)
        out_ref = next(it)
        u_buf, v_buf, sems = next(it), next(it), next(it)

        tile_b = u_buf.shape[0]
        base = pl.program_id(0) * tile_b

        # ---- fused embedding gather: one row DMA per (id, table) -----------
        @pl.loop(0, tile_b)
        def _issue(r):
            uid = uid_ref[base + r]
            iid = iid_ref[base + r]
            pltpu.make_async_copy(u_tbl.at[uid], u_buf.at[r], sems.at[0]).start()
            pltpu.make_async_copy(i_tbl.at[iid], v_buf.at[r], sems.at[1]).start()

        @pl.loop(0, tile_b)
        def _drain(r):
            # Same-shaped dummy descriptors: each wait retires one row copy.
            pltpu.make_async_copy(u_tbl.at[0], u_buf.at[0], sems.at[0]).wait()
            pltpu.make_async_copy(i_tbl.at[0], v_buf.at[0], sems.at[1]).wait()

        # ---- unpack interleaved bf16 pairs (low 16 = GMF, high 16 = MLP) ---
        hi_mask = jnp.uint32(0xFFFF0000)
        uw = u_buf[...]                                   # (TILE_B, E) uint32
        vw = v_buf[...]
        p_mf = pltpu.bitcast(uw << 16, jnp.float32)       # exact bf16 values
        q_mf = pltpu.bitcast(vw << 16, jnp.float32)
        p_mlp = pltpu.bitcast(uw & hi_mask, jnp.float32)
        q_mlp = pltpu.bitcast(vw & hi_mask, jnp.float32)

        # ---- MLP branch: bf16 MXU operands, f32 accumulation ---------------
        x = (jnp.dot(p_mlp.astype(jnp.bfloat16), w0p[...],
                     preferred_element_type=jnp.float32)
             + jnp.dot(q_mlp.astype(jnp.bfloat16), w0q[...],
                       preferred_element_type=jnp.float32)
             + b0[...])
        x = _leaky_relu(x)
        for w_ref, b_ref in hidden:
            x = jnp.dot(x.astype(jnp.bfloat16), w_ref[...],
                        preferred_element_type=jnp.float32) + b_ref[...]
            x = _leaky_relu(x)

        # ---- GMF branch + bias-free head (VPU multiply + lane reduce) ------
        gmf_score = jnp.sum(p_mf * q_mf * wg[...], axis=-1)   # (TILE_B,)
        mlp_score = jnp.sum(x * wm[...], axis=-1)             # (TILE_B,)
        out_ref[...] = (gmf_score + mlp_score).reshape(1, tile_b)

    return kernel


@functools.partial(jax.jit, static_argnames=("num_mlp_layers", "tile_b"))
def _neumf_pallas(user_id, item_id, user_table, item_table, flat_weights,
                  num_mlp_layers, tile_b):
    B = user_id.shape[0]
    e_words = user_table.shape[1]  # = embedding_dim (one uint32 word / feature)

    user_id = jnp.clip(user_id.astype(jnp.int32), 0, user_table.shape[0] - 1)
    item_id = jnp.clip(item_id.astype(jnp.int32), 0, item_table.shape[0] - 1)

    b_pad = _round_up(B, tile_b)
    if b_pad != B:  # pad with id 0 (a valid table row); tail sliced off below
        user_id = jnp.pad(user_id, (0, b_pad - B))
        item_id = jnp.pad(item_id, (0, b_pad - B))

    grid_spec = pltpu.PrefetchScalarGridSpec(
        num_scalar_prefetch=2,
        grid=(b_pad // tile_b,),
        in_specs=(
            [pl.BlockSpec(memory_space=pl.ANY),    # packed user table (HBM)
             pl.BlockSpec(memory_space=pl.ANY)]    # packed item table (HBM)
            # MLP / head weights: full-array blocks with constant index maps
            # -> DMA'd once, VMEM-resident across all grid steps.
            + [pl.BlockSpec(w.shape, lambda i, uid, iid: (0, 0))
               for w in flat_weights]),
        out_specs=pl.BlockSpec((1, tile_b), lambda i, uid, iid: (0, i)),
        scratch_shapes=[
            pltpu.VMEM((tile_b, e_words), jnp.uint32),   # gathered user rows
            pltpu.VMEM((tile_b, e_words), jnp.uint32),   # gathered item rows
            pltpu.SemaphoreType.DMA((2,)),
        ],
    )

    out = pl.pallas_call(
        make_neumf_kernel(num_mlp_layers),
        grid_spec=grid_spec,
        out_shape=jax.ShapeDtypeStruct((1, b_pad), jnp.float32),
        compiler_params=pltpu.CompilerParams(
            dimension_semantics=("parallel",),           # megacore on v7x
            vmem_limit_bytes=32 * 1024 * 1024),
    )(user_id, item_id, user_table, item_table, *flat_weights)

    return out[0, :B].reshape(B, 1)


def neumf_forward(params, user_id, item_id, tile_b=None):
    """NeuMF forward pass (raw head output, shape [B, 1]; no sigmoid)."""
    E = params["embedding_dim"]

    # First MLP layer split over (p_mlp, q_mlp): the lane-axis concat of the
    # PyTorch module never materializes inside the kernel.
    w0, b0 = params["mlp"][0]                       # (2E, H0) bf16, (1, H0) f32
    flat_weights = [w0[:E], w0[E:], b0]
    for w, b in params["mlp"][1:]:
        flat_weights.extend([w, b])

    w_out = params["w_out"]                         # (E + H_last, 1) f32
    flat_weights.append(w_out[:E].reshape(1, E))    # GMF head row
    flat_weights.append(w_out[E:].reshape(1, -1))   # MLP head row

    B = int(user_id.shape[0])
    if tile_b is None:
        # Sweep 4096-8192 at large B.  VMEM footprint at 8192 is still only a
        # few MiB (2 x tile_b x E x 4B gather buffers + small f32
        # intermediates), comfortably under the 32 MiB scoped limit on every
        # chip; keep the grid >= 2 steps where possible so "parallel" can
        # split work across v7x's two TensorCores.
        tile_b = min(4096, _round_up(max(B, 1), 128))

    # TODO(synk): for very large batches the per-row DMA descriptor issue rate
    # (scalar core) becomes the limiter; chunk the gather or use SparseCore
    # embedding lookups instead of TensorCore row DMAs.
    return _neumf_pallas(user_id, item_id,
                         params["user_table"], params["item_table"],
                         tuple(flat_weights),
                         num_mlp_layers=len(params["mlp"]), tile_b=tile_b)


def init_params(key, num_users, num_items, embedding_dim, hidden_dim):
    """Synthetic parameters with the same logical shapes as the PyTorch module.

    The GMF / MLP embedding tables of each side are merged into one
    (N+1, E) uint32 table: word c packs (bf16 GMF value in bits[15:0],
    bf16 MLP value in bits[31:16]) so one 4E-byte row DMA fetches both
    branches.  MLP weights are bf16 (MXU operands); biases / head stay f32.
    """
    E = embedding_dim
    keys = iter(jax.random.split(key, 4 + 2 * len(hidden_dim) + 1))

    def bf16_bits(x):  # f32 -> bf16 -> uint16 bit pattern
        return jax.lax.bitcast_convert_type(x.astype(jnp.bfloat16), jnp.uint16)

    def packed_table(k_gmf, k_mlp, n_rows):
        gmf = jax.random.normal(k_gmf, (n_rows, E), jnp.float32)
        mlp = jax.random.normal(k_mlp, (n_rows, E), jnp.float32)
        lo = bf16_bits(gmf).astype(jnp.uint32)
        hi = bf16_bits(mlp).astype(jnp.uint32)
        return lo | (hi << 16)

    params = {
        "embedding_dim": E,
        "user_table": packed_table(next(keys), next(keys), num_users + 1),
        "item_table": packed_table(next(keys), next(keys), num_items + 1),
    }

    mlp = []
    in_dim = 2 * E
    for h in hidden_dim:
        bound = 1.0 / float(in_dim) ** 0.5
        w = jax.random.uniform(next(keys), (in_dim, h), jnp.float32,
                               -bound, bound).astype(jnp.bfloat16)
        b = jax.random.uniform(next(keys), (1, h), jnp.float32, -bound, bound)
        mlp.append((w, b))
        in_dim = h
    params["mlp"] = mlp

    out_in = hidden_dim[-1] + E
    bound = 1.0 / float(out_in) ** 0.5
    params["w_out"] = jax.random.uniform(next(keys), (out_in, 1), jnp.float32,
                                         -bound, bound)
    return params


def _unpack_table(packed_u32):
    """(N, E) packed uint32 -> (gmf, mlp) f32 tables, each (N, E)."""
    lo = jax.lax.bitcast_convert_type(
        (packed_u32 & 0xFFFF).astype(jnp.uint16), jnp.bfloat16)
    hi = jax.lax.bitcast_convert_type(
        (packed_u32 >> 16).astype(jnp.uint16), jnp.bfloat16)
    return lo.astype(jnp.float32), hi.astype(jnp.float32)


def neumf_reference(params, user_id, item_id):
    """Pure-JAX reference (same bf16 weight / activation policy as the kernel)."""
    u_gmf, u_mlp = _unpack_table(params["user_table"])
    i_gmf, i_mlp = _unpack_table(params["item_table"])
    p_mf, q_mf = u_gmf[user_id], i_gmf[item_id]
    p_mlp, q_mlp = u_mlp[user_id], i_mlp[item_id]

    gmf = p_mf * q_mf
    x = jnp.concatenate([p_mlp, q_mlp], axis=-1)
    for w, b in params["mlp"]:
        x = jnp.dot(x.astype(jnp.bfloat16), w,
                    preferred_element_type=jnp.float32) + b
        x = jnp.where(x >= 0, x, LEAKY_SLOPE * x)

    feat = jnp.concatenate([gmf, x], axis=-1)
    # Bias-free head in f32 (elementwise to avoid TPU default-precision dot).
    return jnp.sum(feat * params["w_out"][:, 0][None, :], axis=-1, keepdims=True)


if __name__ == "__main__":
    num_users = 10
    num_items = 20
    embedding_dim = 32
    hidden_dim = [64, 32]
    batch = 8

    key = jax.random.PRNGKey(0)
    k_params, k_user, k_item = jax.random.split(key, 3)

    params = init_params(k_params, num_users, num_items, embedding_dim,
                         hidden_dim)
    user_id = jax.random.randint(k_user, (batch,), 0, num_users + 1,
                                 dtype=jnp.int32)
    item_id = jax.random.randint(k_item, (batch,), 0, num_items + 1,
                                 dtype=jnp.int32)

    out = neumf_forward(params, user_id, item_id)
    out = jax.block_until_ready(out)

    ref = neumf_reference(params, user_id, item_id)
    assert out.shape == (batch, 1), out.shape
    assert jnp.allclose(out, ref, atol=2e-3, rtol=2e-3), (out, ref)

    print("KERNEL_OK")
</pallas_src>

<mosaic_0001>
module attributes {stable_mosaic.version = 11 : i64} {
  func.func @kernel(%arg0: i32, %arg1: memref<128xi32, #tpu.memory_space<smem>>, %arg2: memref<128xi32, #tpu.memory_space<smem>>, %arg3: memref<11x32xi32, #tpu.memory_space<any>>, %arg4: memref<21x32xi32, #tpu.memory_space<any>>, %arg5: memref<32x64xbf16, #tpu.memory_space<vmem>>, %arg6: memref<32x64xbf16, #tpu.memory_space<vmem>>, %arg7: memref<1x64xf32, #tpu.memory_space<vmem>>, %arg8: memref<64x32xbf16, #tpu.memory_space<vmem>>, %arg9: memref<1x32xf32, #tpu.memory_space<vmem>>, %arg10: memref<1x32xf32, #tpu.memory_space<vmem>>, %arg11: memref<1x32xf32, #tpu.memory_space<vmem>>, %arg12: memref<1x128xf32, #tpu.memory_space<vmem>>, %arg13: memref<128x32xi32, #tpu.memory_space<vmem>>, %arg14: memref<128x32xi32, #tpu.memory_space<vmem>>, %arg15: memref<2x!tpu.dma_semaphore, #tpu.memory_space<semaphore_mem>>) attributes {dimension_semantics = [#tpu.dimension_semantics<parallel>], iteration_bounds = array<i64: 1>, scalar_prefetch = 2 : i64, scratch_operands = 3 : i64, tpu.core_type = #tpu.core_type<tc>, window_params = [{}, {}, {pipeline_mode = #tpu.pipeline_mode<synchronous>, transform_indices = @transform_2, window_bounds = array<i64: 32, 64>}, {pipeline_mode = #tpu.pipeline_mode<synchronous>, transform_indices = @transform_3, window_bounds = array<i64: 32, 64>}, {pipeline_mode = #tpu.pipeline_mode<synchronous>, transform_indices = @transform_4, window_bounds = array<i64: 1, 64>}, {pipeline_mode = #tpu.pipeline_mode<synchronous>, transform_indices = @transform_5, window_bounds = array<i64: 64, 32>}, {pipeline_mode = #tpu.pipeline_mode<synchronous>, transform_indices = @transform_6, window_bounds = array<i64: 1, 32>}, {pipeline_mode = #tpu.pipeline_mode<synchronous>, transform_indices = @transform_7, window_bounds = array<i64: 1, 32>}, {pipeline_mode = #tpu.pipeline_mode<synchronous>, transform_indices = @transform_8, window_bounds = array<i64: 1, 32>}, {transform_indices = @transform_9, window_bounds = array<i64: 1, 128>}]} {
    %c128_i32 = arith.constant 128 : i32
    %0 = arith.muli %arg0, %c128_i32 : i32
    %c0_i32 = arith.constant 0 : i32
    %c128_i32_0 = arith.constant 128 : i32
    %1 = arith.addi %c0_i32, %c128_i32_0 : i32
    %c1_i32 = arith.constant 1 : i32
    scf.for %arg16 = %c0_i32 to %1 step %c1_i32  : i32 {
      %c1_i32_34 = arith.constant 1 : i32
      %55 = arith.muli %arg16, %c1_i32_34 : i32
      %c0_i32_35 = arith.constant 0 : i32
      %56 = arith.addi %c0_i32_35, %55 : i32
      %57 = arith.addi %0, %56 : i32
      %58 = arith.index_cast %57 : i32 to index
      %59 = memref.load %arg1[%58] : memref<128xi32, #tpu.memory_space<smem>>
      %60 = arith.addi %0, %56 : i32
      %61 = arith.index_cast %60 : i32 to index
      %62 = memref.load %arg2[%61] : memref<128xi32, #tpu.memory_space<smem>>
      %c0_i32_36 = arith.constant 0 : i32
      %c0_i32_37 = arith.constant 0 : i32
      %63 = tpu.memref_slice %arg3[%59, %c0_i32_37] : memref<11x32xi32, #tpu.memory_space<any>> -> memref<1x32xi32, #tpu.memory_space<any>>
      %64 = tpu.memref_squeeze %63 : memref<1x32xi32, #tpu.memory_space<any>> -> memref<32xi32, #tpu.memory_space<any>>
      %c0_i32_38 = arith.constant 0 : i32
      %65 = tpu.memref_slice %arg13[%56, %c0_i32_38] : memref<128x32xi32, #tpu.memory_space<vmem>> -> memref<1x32xi32, #tpu.memory_space<vmem>>
      %66 = tpu.memref_squeeze %65 : memref<1x32xi32, #tpu.memory_space<vmem>> -> memref<32xi32, #tpu.memory_space<vmem>>
      %67 = tpu.memref_slice %arg15[%c0_i32_36] : memref<2x!tpu.dma_semaphore, #tpu.memory_space<semaphore_mem>> -> memref<1x!tpu.dma_semaphore, #tpu.memory_space<semaphore_mem>>
      %68 = tpu.memref_squeeze %67 : memref<1x!tpu.dma_semaphore, #tpu.memory_space<semaphore_mem>> -> memref<!tpu.dma_semaphore, #tpu.memory_space<semaphore_mem>>
      tpu.enqueue_dma source(%64 : memref<32xi32, #tpu.memory_space<any>>) target(%66 : memref<32xi32, #tpu.memory_space<vmem>>) target_semaphore(%68 : memref<!tpu.dma_semaphore, #tpu.memory_space<semaphore_mem>>)
      %c1_i32_39 = arith.constant 1 : i32
      %c0_i32_40 = arith.constant 0 : i32
      %69 = tpu.memref_slice %arg4[%62, %c0_i32_40] : memref<21x32xi32, #tpu.memory_space<any>> -> memref<1x32xi32, #tpu.memory_space<any>>
      %70 = tpu.memref_squeeze %69 : memref<1x32xi32, #tpu.memory_space<any>> -> memref<32xi32, #tpu.memory_space<any>>
      %c0_i32_41 = arith.constant 0 : i32
      %71 = tpu.memref_slice %arg14[%56, %c0_i32_41] : memref<128x32xi32, #tpu.memory_space<vmem>> -> memref<1x32xi32, #tpu.memory_space<vmem>>
      %72 = tpu.memref_squeeze %71 : memref<1x32xi32, #tpu.memory_space<vmem>> -> memref<32xi32, #tpu.memory_space<vmem>>
      %73 = tpu.memref_slice %arg15[%c1_i32_39] : memref<2x!tpu.dma_semaphore, #tpu.memory_space<semaphore_mem>> -> memref<1x!tpu.dma_semaphore, #tpu.memory_space<semaphore_mem>>
      %74 = tpu.memref_squeeze %73 : memref<1x!tpu.dma_semaphore, #tpu.memory_space<semaphore_mem>> -> memref<!tpu.dma_semaphore, #tpu.memory_space<semaphore_mem>>
      tpu.enqueue_dma source(%70 : memref<32xi32, #tpu.memory_space<any>>) target(%72 : memref<32xi32, #tpu.memory_space<vmem>>) target_semaphore(%74 : memref<!tpu.dma_semaphore, #tpu.memory_space<semaphore_mem>>)
    }
    %c128_i32_1 = arith.constant 128 : i32
    %c0_i32_2 = arith.constant 0 : i32
    %c128_i32_3 = arith.constant 128 : i32
    %2 = arith.addi %c0_i32_2, %c128_i32_3 : i32
    %c1_i32_4 = arith.constant 1 : i32
    scf.for %arg16 = %c0_i32_2 to %2 step %c1_i32_4  : i32 {
      %c0_i32_34 = arith.constant 0 : i32
      %c0_i32_35 = arith.constant 0 : i32
      %c0_i32_36 = arith.constant 0 : i32
      %c0_i32_37 = arith.constant 0 : i32
      %55 = tpu.memref_slice %arg3[%c0_i32_34, %c0_i32_37] : memref<11x32xi32, #tpu.memory_space<any>> -> memref<1x32xi32, #tpu.memory_space<any>>
      %56 = tpu.memref_squeeze %55 : memref<1x32xi32, #tpu.memory_space<any>> -> memref<32xi32, #tpu.memory_space<any>>
      %c0_i32_38 = arith.constant 0 : i32
      %57 = tpu.memref_slice %arg13[%c0_i32_35, %c0_i32_38] : memref<128x32xi32, #tpu.memory_space<vmem>> -> memref<1x32xi32, #tpu.memory_space<vmem>>
      %58 = tpu.memref_squeeze %57 : memref<1x32xi32, #tpu.memory_space<vmem>> -> memref<32xi32, #tpu.memory_space<vmem>>
      %59 = tpu.memref_slice %arg15[%c0_i32_36] : memref<2x!tpu.dma_semaphore, #tpu.memory_space<semaphore_mem>> -> memref<1x!tpu.dma_semaphore, #tpu.memory_space<semaphore_mem>>
      %60 = tpu.memref_squeeze %59 : memref<1x!tpu.dma_semaphore, #tpu.memory_space<semaphore_mem>> -> memref<!tpu.dma_semaphore, #tpu.memory_space<semaphore_mem>>
      tpu.wait_dma2 semaphore(%60 : memref<!tpu.dma_semaphore, #tpu.memory_space<semaphore_mem>>) src(%56 : memref<32xi32, #tpu.memory_space<any>>) dst(%58 : memref<32xi32, #tpu.memory_space<vmem>>)
      %c0_i32_39 = arith.constant 0 : i32
      %c0_i32_40 = arith.constant 0 : i32
      %c1_i32_41 = arith.constant 1 : i32
      %c0_i32_42 = arith.constant 0 : i32
      %61 = tpu.memref_slice %arg4[%c0_i32_39, %c0_i32_42] : memref<21x32xi32, #tpu.memory_space<any>> -> memref<1x32xi32, #tpu.memory_space<any>>
      %62 = tpu.memref_squeeze %61 : memref<1x32xi32, #tpu.memory_space<any>> -> memref<32xi32, #tpu.memory_space<any>>
      %c0_i32_43 = arith.constant 0 : i32
      %63 = tpu.memref_slice %arg14[%c0_i32_40, %c0_i32_43] : memref<128x32xi32, #tpu.memory_space<vmem>> -> memref<1x32xi32, #tpu.memory_space<vmem>>
      %64 = tpu.memref_squeeze %63 : memref<1x32xi32, #tpu.memory_space<vmem>> -> memref<32xi32, #tpu.memory_space<vmem>>
      %65 = tpu.memref_slice %arg15[%c1_i32_41] : memref<2x!tpu.dma_semaphore, #tpu.memory_space<semaphore_mem>> -> memref<1x!tpu.dma_semaphore, #tpu.memory_space<semaphore_mem>>
      %66 = tpu.memref_squeeze %65 : memref<1x!tpu.dma_semaphore, #tpu.memory_space<semaphore_mem>> -> memref<!tpu.dma_semaphore, #tpu.memory_space<semaphore_mem>>
      tpu.wait_dma2 semaphore(%66 : memref<!tpu.dma_semaphore, #tpu.memory_space<semaphore_mem>>) src(%62 : memref<32xi32, #tpu.memory_space<any>>) dst(%64 : memref<32xi32, #tpu.memory_space<vmem>>)
    }
    %c0 = arith.constant 0 : index
    %c0_5 = arith.constant 0 : index
    %3 = vector.load %arg13[%c0, %c0_5] : memref<128x32xi32, #tpu.memory_space<vmem>>, vector<128x32xi32>
    %c0_6 = arith.constant 0 : index
    %c0_7 = arith.constant 0 : index
    %4 = vector.load %arg14[%c0_6, %c0_7] : memref<128x32xi32, #tpu.memory_space<vmem>>, vector<128x32xi32>
    %c16_i32 = arith.constant 16 : i32
    %5 = vector.broadcast %c16_i32 : i32 to vector<128x32xi32>
    %6 = arith.shli %3, %5 : vector<128x32xi32>
    %7 = tpu.bitcast %6 : vector<128x32xi32> -> vector<128x32xf32>
    %c16_i32_8 = arith.constant 16 : i32
    %8 = vector.broadcast %c16_i32_8 : i32 to vector<128x32xi32>
    %9 = arith.shli %4, %8 : vector<128x32xi32>
    %10 = tpu.bitcast %9 : vector<128x32xi32> -> vector<128x32xf32>
    %c-65536_i32 = arith.constant -65536 : i32
    %11 = vector.broadcast %c-65536_i32 : i32 to vector<128x32xi32>
    %12 = arith.andi %3, %11 : vector<128x32xi32>
    %13 = tpu.bitcast %12 : vector<128x32xi32> -> vector<128x32xf32>
    %c-65536_i32_9 = arith.constant -65536 : i32
    %14 = vector.broadcast %c-65536_i32_9 : i32 to vector<128x32xi32>
    %15 = arith.andi %4, %14 : vector<128x32xi32>
    %16 = tpu.bitcast %15 : vector<128x32xi32> -> vector<128x32xf32>
    %17 = arith.truncf %13 : vector<128x32xf32> to vector<128x32xbf16>
    %c0_10 = arith.constant 0 : index
    %c0_11 = arith.constant 0 : index
    %18 = vector.load %arg5[%c0_10, %c0_11] : memref<32x64xbf16, #tpu.memory_space<vmem>>, vector<32x64xbf16>
    %cst = arith.constant dense<0.000000e+00> : vector<128x64xf32>
    %19 = tpu.matmul %17, %18, %cst {dimension_numbers = #tpu.dot_dimension_numbers<[1], [0], [0], [1], [0, 0, 1, 1], [], []>} : vector<128x32xbf16>, vector<32x64xbf16>, vector<128x64xf32> -> vector<128x64xf32>
    %20 = arith.truncf %16 : vector<128x32xf32> to vector<128x32xbf16>
    %c0_12 = arith.constant 0 : index
    %c0_13 = arith.constant 0 : index
    %21 = vector.load %arg6[%c0_12, %c0_13] : memref<32x64xbf16, #tpu.memory_space<vmem>>, vector<32x64xbf16>
    %cst_14 = arith.constant dense<0.000000e+00> : vector<128x64xf32>
    %22 = tpu.matmul %20, %21, %cst_14 {dimension_numbers = #tpu.dot_dimension_numbers<[1], [0], [0], [1], [0, 0, 1, 1], [], []>} : vector<128x32xbf16>, vector<32x64xbf16>, vector<128x64xf32> -> vector<128x64xf32>
    %23 = arith.addf %19, %22 : vector<128x64xf32>
    %c0_15 = arith.constant 0 : index
    %c0_16 = arith.constant 0 : index
    %24 = vector.load %arg7[%c0_15, %c0_16] : memref<1x64xf32, #tpu.memory_space<vmem>>, vector<1x64xf32>
    %25 = vector.broadcast %24 : vector<1x64xf32> to vector<128x64xf32>
    %26 = arith.addf %23, %25 : vector<128x64xf32>
    %cst_17 = arith.constant 0.000000e+00 : f32
    %27 = vector.broadcast %cst_17 : f32 to vector<128x64xf32>
    %28 = arith.cmpf oge, %26, %27 : vector<128x64xf32>
    %cst_18 = arith.constant 0.00999999977 : f32
    %29 = vector.broadcast %cst_18 : f32 to vector<128x64xf32>
    %30 = arith.mulf %29, %26 : vector<128x64xf32>
    %31 = arith.select %28, %26, %30 : vector<128x64xi1>, vector<128x64xf32>
    %32 = arith.truncf %31 : vector<128x64xf32> to vector<128x64xbf16>
    %c0_19 = arith.constant 0 : index
    %c0_20 = arith.constant 0 : index
    %33 = vector.load %arg8[%c0_19, %c0_20] : memref<64x32xbf16, #tpu.memory_space<vmem>>, vector<64x32xbf16>
    %cst_21 = arith.constant dense<0.000000e+00> : vector<128x32xf32>
    %34 = tpu.matmul %32, %33, %cst_21 {dimension_numbers = #tpu.dot_dimension_numbers<[1], [0], [0], [1], [0, 0, 1, 1], [], []>} : vector<128x64xbf16>, vector<64x32xbf16>, vector<128x32xf32> -> vector<128x32xf32>
    %c0_22 = arith.constant 0 : index
    %c0_23 = arith.constant 0 : index
    %35 = vector.load %arg9[%c0_22, %c0_23] : memref<1x32xf32, #tpu.memory_space<vmem>>, vector<1x32xf32>
    %36 = vector.broadcast %35 : vector<1x32xf32> to vector<128x32xf32>
    %37 = arith.addf %34, %36 : vector<128x32xf32>
    %cst_24 = arith.constant 0.000000e+00 : f32
    %38 = vector.broadcast %cst_24 : f32 to vector<128x32xf32>
    %39 = arith.cmpf oge, %37, %38 : vector<128x32xf32>
    %cst_25 = arith.constant 0.00999999977 : f32
    %40 = vector.broadcast %cst_25 : f32 to vector<128x32xf32>
    %41 = arith.mulf %40, %37 : vector<128x32xf32>
    %42 = arith.select %39, %37, %41 : vector<128x32xi1>, vector<128x32xf32>
    %43 = arith.mulf %7, %10 : vector<128x32xf32>
    %c0_26 = arith.constant 0 : index
    %c0_27 = arith.constant 0 : index
    %44 = vector.load %arg10[%c0_26, %c0_27] : memref<1x32xf32, #tpu.memory_space<vmem>>, vector<1x32xf32>
    %45 = vector.broadcast %44 : vector<1x32xf32> to vector<128x32xf32>
    %46 = arith.mulf %43, %45 : vector<128x32xf32>
    %cst_28 = arith.constant dense<0.000000e+00> : vector<128xf32>
    %47 = vector.multi_reduction <add>, %46, %cst_28 [1] : vector<128x32xf32> to vector<128xf32>
    %c0_29 = arith.constant 0 : index
    %c0_30 = arith.constant 0 : index
    %48 = vector.load %arg11[%c0_29, %c0_30] : memref<1x32xf32, #tpu.memory_space<vmem>>, vector<1x32xf32>
    %49 = vector.broadcast %48 : vector<1x32xf32> to vector<128x32xf32>
    %50 = arith.mulf %42, %49 : vector<128x32xf32>
    %cst_31 = arith.constant dense<0.000000e+00> : vector<128xf32>
    %51 = vector.multi_reduction <add>, %50, %cst_31 [1] : vector<128x32xf32> to vector<128xf32>
    %52 = arith.addf %47, %51 : vector<128xf32>
    %53 = vector.shape_cast %52 : vector<128xf32> to vector<1x128xf32>
    %c0_32 = arith.constant 0 : index
    %c0_33 = arith.constant 0 : index
    %54 = vector.load %arg12[%c0_32, %c0_33] : memref<1x128xf32, #tpu.memory_space<vmem>>, vector<1x128xf32>
    tpu.vector_store %arg12[%c0_32, %c0_33], %53 {strides = array<i32>} : memref<1x128xf32, #tpu.memory_space<vmem>>, vector<1x128xf32>,
    return
  }
  func.func @transform_2(%arg0: i32, %arg1: memref<128xi32, #tpu.memory_space<smem>>, %arg2: memref<128xi32, #tpu.memory_space<smem>>) -> (i32, i32) {
    %c0_i32 = arith.constant 0 : i32
    %c0_i32_0 = arith.constant 0 : i32
    %c0_i32_1 = arith.constant 0 : i32
    return %c0_i32, %c0_i32_0 : i32, i32
  }
  func.func @transform_3(%arg0: i32, %arg1: memref<128xi32, #tpu.memory_space<smem>>, %arg2: memref<128xi32, #tpu.memory_space<smem>>) -> (i32, i32) {
    %c0_i32 = arith.constant 0 : i32
    %c0_i32_0 = arith.constant 0 : i32
    %c0_i32_1 = arith.constant 0 : i32
    return %c0_i32, %c0_i32_0 : i32, i32
  }
  func.func @transform_4(%arg0: i32, %arg1: memref<128xi32, #tpu.memory_space<smem>>, %arg2: memref<128xi32, #tpu.memory_space<smem>>) -> (i32, i32) {
    %c0_i32 = arith.constant 0 : i32
    %c0_i32_0 = arith.constant 0 : i32
    %c0_i32_1 = arith.constant 0 : i32
    return %c0_i32, %c0_i32_0 : i32, i32
  }
  func.func @transform_5(%arg0: i32, %arg1: memref<128xi32, #tpu.memory_space<smem>>, %arg2: memref<128xi32, #tpu.memory_space<smem>>) -> (i32, i32) {
    %c0_i32 = arith.constant 0 : i32
    %c0_i32_0 = arith.constant 0 : i32
    %c0_i32_1 = arith.constant 0 : i32
    return %c0_i32, %c0_i32_0 : i32, i32
  }
  func.func @transform_6(%arg0: i32, %arg1: memref<128xi32, #tpu.memory_space<smem>>, %arg2: memref<128xi32, #tpu.memory_space<smem>>) -> (i32, i32) {
    %c0_i32 = arith.constant 0 : i32
    %c0_i32_0 = arith.constant 0 : i32
    %c0_i32_1 = arith.constant 0 : i32
    return %c0_i32, %c0_i32_0 : i32, i32
  }
  func.func @transform_7(%arg0: i32, %arg1: memref<128xi32, #tpu.memory_space<smem>>, %arg2: memref<128xi32, #tpu.memory_space<smem>>) -> (i32, i32) {
    %c0_i32 = arith.constant 0 : i32
    %c0_i32_0 = arith.constant 0 : i32
    %c0_i32_1 = arith.constant 0 : i32
    return %c0_i32, %c0_i32_0 : i32, i32
  }
  func.func @transform_8(%arg0: i32, %arg1: memref<128xi32, #tpu.memory_space<smem>>, %arg2: memref<128xi32, #tpu.memory_space<smem>>) -> (i32, i32) {
    %c0_i32 = arith.constant 0 : i32
    %c0_i32_0 = arith.constant 0 : i32
    %c0_i32_1 = arith.constant 0 : i32
    return %c0_i32, %c0_i32_0 : i32, i32
  }
  func.func @transform_9(%arg0: i32, %arg1: memref<128xi32, #tpu.memory_space<smem>>, %arg2: memref<128xi32, #tpu.memory_space<smem>>) -> (i32, i32) {
    %c0_i32 = arith.constant 0 : i32
    %c0_i32_0 = arith.constant 0 : i32
    return %c0_i32, %arg0 : i32, i32
  }
}

</mosaic_0001>

<llo_original>
// kernel: _neumf_pallas.1
$region0: #{_neumf_pallas.1}
  #allocation0 [shape = 'u32[]', space=smem, size = 0x4, offset = 0x4, fixed_abs, tag = 'smem constant byte address 0x4 - core index']
  #allocation1 [shape = 'u32[144,128]{1,0:T(1,128)}', space=vmem, size = 0x12000, scoped, tag = 'internal scratch']
  #allocation2 [shape = 's32[128,32]{1,0:T(8,128)}', space=vmem, size = 0x10000, scoped, tag = 'scratch operand']
  #allocation3 [shape = 's32[128,32]{1,0:T(8,128)}', space=vmem, size = 0x10000, scoped, tag = 'scratch operand']
  #allocation4 [shape = 's32[2]{0}', space=sflag, size = 0x8, scoped, tag = 'scratch operand']
  #allocation5 [shape = 's32[1]{0}', space=sflag, size = 0x4, scoped, tag = 'scoped memory for _neumf_pallas.1']
  #allocation6 [shape = 'u8[512]{0}', space=smem, size = 0x200, scoped, tag = 'prefetched SMEM operand 0']
  #allocation7 [shape = 'u8[512]{0}', space=smem, size = 0x200, scoped, tag = 'prefetched SMEM operand 1']
  #allocation10 [shape = 's32[]', space=sflag, size = 0x4, offset = 0, fixed_abs, tag = 'sflag constant byte address 0x0 - dummy sync flag']
  #allocation11 [shape = 's32[]', space=sflag, size = 0x4, offset = 0, fixed_abs, tag = 'sflag constant byte address 0x0 - dummy sync flag']
  %s0 = inlined_call_operand.vmem [shape: s32[128], index: 0, kind: input, shape index: {}]
  %s1 = inlined_call_operand.vmem [shape: s32[128], index: 1, kind: input, shape index: {}]
  %s2 = inlined_call_operand.vmem [shape: u32[11,32], index: 2, kind: input, shape index: {}]
  %s3 = inlined_call_operand.vmem [shape: u32[21,32], index: 3, kind: input, shape index: {}]
  %s4 = inlined_call_operand.vmem [shape: bf16[32,64], index: 4, kind: input, shape index: {}]
  %s5 = inlined_call_operand.hbm [shape: bf16[32,64], index: 5, kind: input, shape index: {}]
  %s6 = inlined_call_operand.vmem [shape: f32[1,64], index: 6, kind: input, shape index: {}]
  %s7 = inlined_call_operand.vmem [shape: bf16[64,32], index: 7, kind: input, shape index: {}]
  %s8 = inlined_call_operand.vmem [shape: f32[1,32], index: 8, kind: input, shape index: {}]
  %s9 = inlined_call_operand.vmem [shape: f32[1,32], index: 9, kind: input, shape index: {}]
  %s10 = inlined_call_operand.vmem [shape: f32[1,32], index: 10, kind: input, shape index: {}]
  %s11 = inlined_call_operand.vmem [shape: f32[1,128], index: 11, kind: output, shape index: {}]
  %s12 = sld [smem:[#allocation0]]
  $region116: #{_neumf_pallas.1} parent=0
    _
  %s14 = ssub.s32 1, %s12
  %s15 = scalar_select 0, %s14, %s12
  %s16 = sshll.u32 %s0, 4
  %s17 = int_to_ptr.vmem [resolvable:$true] %s16
  %19 = dma.vmem_to_smem %s17, 16, [#allocation6], [#allocation5]
  %s20 = sshll.u32 %s1, 4
  %s21 = int_to_ptr.vmem [resolvable:$true] %s20
  %23 = dma.vmem_to_smem %s21, 16, [#allocation7], [#allocation5]
  %24 = dma.done [#allocation5], 32
  %25 = sfence
  $region1: #{_neumf_pallas.1} parent=0
    #allocation8 [shape = 'u8[8192]{0}', space=vmem, size = 0x2000, scoped, tag = 'input window, operand 5, single buffered']
    #allocation9 [shape = 's32[1]{0}', space=sflag, size = 0x4, scoped, tag = 'scoped memory for _neumf_pallas.1']
    %26 = vsyncpa [#allocation9], 0
    // Predicated region
    $region2: #{_neumf_pallas.1} parent=1 // pred_check
      _
    $region3: #{_neumf_pallas.1} parent=1 // pred_check_branch
      %28 = sbr.rel (0) target = $region5
    $region4: #{_neumf_pallas.1} parent=1 // pred_region
      _
    $region5: #{_neumf_pallas.1} parent=1 // pred_fallthru
      _
    // Predicated region
    $region6: #{_neumf_pallas.1} parent=1 // pred_check
      _
    $region7: #{_neumf_pallas.1} parent=1 // pred_check_branch
      %30 = sbr.rel (0) target = $region9
    $region8: #{_neumf_pallas.1} parent=1 // pred_region
      %s32 = ssub.s32 256, 256
      %33 = vsyncadd [#allocation9], %s32
      %s34 = sshll.u32 [#allocation8], 4
      %s35 = int_to_ptr.vmem [resolvable:$true] %s34
      %40 = dma.hbm_to_vmem [thread:$0]  %s5, 256, %s35, [#allocation9], 64, 64, 4
    $region9: #{_neumf_pallas.1} parent=1 // pred_fallthru
      _
    // Predicated region
    $region10: #{_neumf_pallas.1} parent=1 // pred_check
      _
    $region11: #{_neumf_pallas.1} parent=1 // pred_check_branch
      %42 = sbr.rel (0) target = $region13
    $region12: #{_neumf_pallas.1} parent=1 // pred_region
      _
    $region13: #{_neumf_pallas.1} parent=1 // pred_fallthru
      _
    // Predicated region
    $region14: #{_neumf_pallas.1} parent=1 // pred_check
      _
    $region15: #{_neumf_pallas.1} parent=1 // pred_check_branch
      %44 = sbr.rel (0) target = $region17
    $region16: #{_neumf_pallas.1} parent=1 // pred_region
      _
    $region17: #{_neumf_pallas.1} parent=1 // pred_fallthru
      _
    // Predicated region
    $region18: #{_neumf_pallas.1} parent=1 // pred_check
      _
    $region19: #{_neumf_pallas.1} parent=1 // pred_check_branch
      %46 = sbr.rel (0) target = $region21
    $region20: #{_neumf_pallas.1} parent=1 // pred_region
      _
    $region21: #{_neumf_pallas.1} parent=1 // pred_fallthru
      _
    // Predicated region
    $region22: #{_neumf_pallas.1} parent=1 // pred_check
      _
    $region23: #{_neumf_pallas.1} parent=1 // pred_check_branch
      %48 = sbr.rel (0) target = $region25
    $region24: #{_neumf_pallas.1} parent=1 // pred_region
      _
    $region25: #{_neumf_pallas.1} parent=1 // pred_fallthru
      _
    // Predicated region
    $region26: #{_neumf_pallas.1} parent=1 // pred_check
      _
    $region27: #{_neumf_pallas.1} parent=1 // pred_check_branch
      %50 = sbr.rel (0) target = $region29
    $region28: #{_neumf_pallas.1} parent=1 // pred_region
      _
    $region29: #{_neumf_pallas.1} parent=1 // pred_fallthru
      _
    // Predicated region
    $region30: #{_neumf_pallas.1} parent=1 // pred_check
      _
    $region31: #{_neumf_pallas.1} parent=1 // pred_check_branch
      %52 = sbr.rel (0) target = $region33
    $region32: #{_neumf_pallas.1} parent=1 // pred_region
      %53 = dma.done [#allocation9], 256
    $region33: #{_neumf_pallas.1} parent=1 // pred_fallthru
      _
    %s55 = smul.u32 0, 128
    loop: start=0, step=1, limit=128
    $region34: #{_neumf_pallas.1} parent=1 // loop_pre_header
      _
    $region35: #{_neumf_pallas.1} parent=1 // loop_header
      %s57 = sphi 0, %s61
      %p58 = scmp.ge.s32.totalorder %s57, 128
    $region36: #{_neumf_pallas.1} parent=1 // loop_header_branch
      %60 = sbr.rel (%p58) target = $region40
    $region37: #{_neumf_pallas.1} parent=1 // loop_body
      %s62 = sadd.s32 %s55, %s57
      %s63 = sld [smem:[#allocation6 + %s62]]
      %s64 = sld [smem:[#allocation7 + %s62]]
      %s65 = scalar_lea.vmem %s2, %s63
      %s66 = scalar_lea.vmem [#allocation2], %s57
      %p68 = scmp.lt.u32.totalorder 1, 8
      %p69 = pneg %p68
      // Predicated region
      $region41: #{_neumf_pallas.1} parent=37 // pred_check
        _
      $region42: #{_neumf_pallas.1} parent=37 // pred_check_branch
        %71 = sbr.rel (%p68) target = $region44
      $region43: #{_neumf_pallas.1} parent=37 // pred_region
        %s87 = sand.u32 1, 7
        %p88 = scmp.eq.s32.totalorder %s87, 0
        %p89 = pneg %p88
        // Predicated region
        $region56: #{_neumf_pallas.1} parent=43 // pred_check
          _
        $region57: #{_neumf_pallas.1} parent=43 // pred_check_branch
          %91 = sbr.rel (%p88) target = $region59
        $region58: #{_neumf_pallas.1} parent=43 // pred_region
          %s92 = sand.u32 1, 7
          %s93 = ssub.s32 1, %s92
          %s94 = scalar_lea.vmem %s65, %s93
          %s95 = ssub.s32 1, %s92
          %s96 = scalar_lea.vmem %s66, %s95 [#allocation2]
          %s97 = sshll.u32 1, %s92
          %s98 = ssub.s32 %s97, 1
          loop: start=0, step=1, limit=1
          $region60: #{_neumf_pallas.1} parent=58 // loop_pre_header
            _
          $region61: #{_neumf_pallas.1} parent=58 // loop_header
            %s100 = sphi 0, %s104
            %p101 = scmp.ge.s32.totalorder %s100, 1
            %s105 = sphi %s94, %s94
            %s106 = sphi %s96, %s96
          $region62: #{_neumf_pallas.1} parent=58 // loop_header_branch
            %103 = sbr.rel (%p101) target = $region66
          $region63: #{_neumf_pallas.1} parent=58 // loop_body
            %v107 = vld [vmem:[%s105] sm:%s98]
            %108 = vst [vmem:[%s106] sm:%s98] %v107
          $region64: #{_neumf_pallas.1} parent=58 // loop_footer
            %s104 = sadd.s32 1, %s100
          $region65: #{_neumf_pallas.1} parent=58 // loop_footer_branch
            %99 = sbr.rel target = $region61
          $region66: #{_neumf_pallas.1} parent=58 // loop_exit
            _
        $region59: #{_neumf_pallas.1} parent=43 // pred_fallthru
          _
      $region44: #{_neumf_pallas.1} parent=37 // pred_fallthru
        _
      // Predicated region
      $region45: #{_neumf_pallas.1} parent=37 // pred_check
        %p72 = pneg %p68
      $region46: #{_neumf_pallas.1} parent=37 // pred_check_branch
        %74 = sbr.rel (%p72) target = $region48
      $region47: #{_neumf_pallas.1} parent=37 // pred_region
        %s75 = sshll.u32 1, 1
        %s76 = ssub.s32 %s75, 1
        loop: start=0, step=1, limit=1
        $region49: #{_neumf_pallas.1} parent=47 // loop_pre_header
          _
        $region50: #{_neumf_pallas.1} parent=47 // loop_header
          %s78 = sphi 0, %s82
          %p79 = scmp.ge.s32.totalorder %s78, 1
          %s83 = sphi %s65, %s65
          %s84 = sphi %s66, %s66
        $region51: #{_neumf_pallas.1} parent=47 // loop_header_branch
          %81 = sbr.rel (%p79) target = $region55
        $region52: #{_neumf_pallas.1} parent=47 // loop_body
          %v85 = vld [vmem:[%s83] sm:%s76]
          %86 = vst [vmem:[%s84] sm:%s76] %v85
        $region53: #{_neumf_pallas.1} parent=47 // loop_footer
          %s82 = sadd.s32 1, %s78
        $region54: #{_neumf_pallas.1} parent=47 // loop_footer_branch
          %77 = sbr.rel target = $region50
        $region55: #{_neumf_pallas.1} parent=47 // loop_exit
          _
      $region48: #{_neumf_pallas.1} parent=37 // pred_fallthru
        _
      // Predicated region
      $region67: #{_neumf_pallas.1} parent=37 // pred_check
        _
      $region68: #{_neumf_pallas.1} parent=37 // pred_check_branch
        %111 = sbr.rel (0) target = $region70
      $region69: #{_neumf_pallas.1} parent=37 // pred_region
        %112 = vsyncadd [#allocation4], 16
      $region70: #{_neumf_pallas.1} parent=37 // pred_fallthru
        _
      %s113 = scalar_lea.vmem %s3, %s64
      %s114 = scalar_lea.vmem [#allocation3], %s57
      %s115 = scalar_lea.sflag [#allocation4], 1
      %p117 = scmp.lt.u32.totalorder 1, 8
      %p118 = pneg %p117
      // Predicated region
      $region71: #{_neumf_pallas.1} parent=37 // pred_check
        _
      $region72: #{_neumf_pallas.1} parent=37 // pred_check_branch
        %120 = sbr.rel (%p117) target = $region74
      $region73: #{_neumf_pallas.1} parent=37 // pred_region
        %s136 = sand.u32 1, 7
        %p137 = scmp.eq.s32.totalorder %s136, 0
        %p138 = pneg %p137
        // Predicated region
        $region86: #{_neumf_pallas.1} parent=73 // pred_check
          _
        $region87: #{_neumf_pallas.1} parent=73 // pred_check_branch
          %140 = sbr.rel (%p137) target = $region89
        $region88: #{_neumf_pallas.1} parent=73 // pred_region
          %s141 = sand.u32 1, 7
          %s142 = ssub.s32 1, %s141
          %s143 = scalar_lea.vmem %s113, %s142
          %s144 = ssub.s32 1, %s141
          %s145 = scalar_lea.vmem %s114, %s144 [#allocation3]
          %s146 = sshll.u32 1, %s141
          %s147 = ssub.s32 %s146, 1
          loop: start=0, step=1, limit=1
          $region90: #{_neumf_pallas.1} parent=88 // loop_pre_header
            _
          $region91: #{_neumf_pallas.1} parent=88 // loop_header
            %s149 = sphi 0, %s153
            %p150 = scmp.ge.s32.totalorder %s149, 1
            %s154 = sphi %s143, %s143
            %s155 = sphi %s145, %s145
          $region92: #{_neumf_pallas.1} parent=88 // loop_header_branch
            %152 = sbr.rel (%p150) target = $region96
          $region93: #{_neumf_pallas.1} parent=88 // loop_body
            %v156 = vld [vmem:[%s154] sm:%s147]
            %157 = vst [vmem:[%s155] sm:%s147] %v156
          $region94: #{_neumf_pallas.1} parent=88 // loop_footer
            %s153 = sadd.s32 1, %s149
          $region95: #{_neumf_pallas.1} parent=88 // loop_footer_branch
            %148 = sbr.rel target = $region91
          $region96: #{_neumf_pallas.1} parent=88 // loop_exit
            _
        $region89: #{_neumf_pallas.1} parent=73 // pred_fallthru
          _
      $region74: #{_neumf_pallas.1} parent=37 // pred_fallthru
        _
      // Predicated region
      $region75: #{_neumf_pallas.1} parent=37 // pred_check
        %p121 = pneg %p117
      $region76: #{_neumf_pallas.1} parent=37 // pred_check_branch
        %123 = sbr.rel (%p121) target = $region78
      $region77: #{_neumf_pallas.1} parent=37 // pred_region
        %s124 = sshll.u32 1, 1
        %s125 = ssub.s32 %s124, 1
        loop: start=0, step=1, limit=1
        $region79: #{_neumf_pallas.1} parent=77 // loop_pre_header
          _
        $region80: #{_neumf_pallas.1} parent=77 // loop_header
          %s127 = sphi 0, %s131
          %p128 = scmp.ge.s32.totalorder %s127, 1
          %s132 = sphi %s113, %s113
          %s133 = sphi %s114, %s114
        $region81: #{_neumf_pallas.1} parent=77 // loop_header_branch
          %130 = sbr.rel (%p128) target = $region85
        $region82: #{_neumf_pallas.1} parent=77 // loop_body
          %v134 = vld [vmem:[%s132] sm:%s125]
          %135 = vst [vmem:[%s133] sm:%s125] %v134
        $region83: #{_neumf_pallas.1} parent=77 // loop_footer
          %s131 = sadd.s32 1, %s127
        $region84: #{_neumf_pallas.1} parent=77 // loop_footer_branch
          %126 = sbr.rel target = $region80
        $region85: #{_neumf_pallas.1} parent=77 // loop_exit
          _
      $region78: #{_neumf_pallas.1} parent=37 // pred_fallthru
        _
      // Predicated region
      $region97: #{_neumf_pallas.1} parent=37 // pred_check
        _
      $region98: #{_neumf_pallas.1} parent=37 // pred_check_branch
        %160 = sbr.rel (0) target = $region100
      $region99: #{_neumf_pallas.1} parent=37 // pred_region
        %161 = vsyncadd %s115, 16
      $region100: #{_neumf_pallas.1} parent=37 // pred_fallthru
        _
    $region38: #{_neumf_pallas.1} parent=1 // loop_footer
      %s61 = sadd.s32 1, %s57
    $region39: #{_neumf_pallas.1} parent=1 // loop_footer_branch
      %56 = sbr.rel target = $region35
    $region40: #{_neumf_pallas.1} parent=1 // loop_exit
      _
    loop: start=0, step=1, limit=128
    $region101: #{_neumf_pallas.1} parent=1 // loop_pre_header
      _
    $region102: #{_neumf_pallas.1} parent=1 // loop_header
      %s163 = sphi 0, %s167
      %p164 = scmp.ge.s32.totalorder %s163, 128
    $region103: #{_neumf_pallas.1} parent=1 // loop_header_branch
      %166 = sbr.rel (%p164) target = $region107
    $region104: #{_neumf_pallas.1} parent=1 // loop_body
      %169 = dma.done [#allocation4], 16
      %s170 = scalar_lea.sflag [#allocation4], 1
      %172 = dma.done %s170, 16
    $region105: #{_neumf_pallas.1} parent=1 // loop_footer
      %s167 = sadd.s32 1, %s163
    $region106: #{_neumf_pallas.1} parent=1 // loop_footer_branch
      %162 = sbr.rel target = $region102
    $region107: #{_neumf_pallas.1} parent=1 // loop_exit
      _
    %v173 = vld [vmem:[#allocation2] sm:$0xff]
    %v174 = vld [vmem:[#allocation2 + $0x8] sm:$0xff]
    %v175 = vld [vmem:[#allocation2 + $0x10] sm:$0xff]
    %v176 = vld [vmem:[#allocation2 + $0x18] sm:$0xff]
    %v177 = vld [vmem:[#allocation2 + $0x20] sm:$0xff]
    %v178 = vld [vmem:[#allocation2 + $0x28] sm:$0xff]
    %v179 = vld [vmem:[#allocation2 + $0x30] sm:$0xff]
    %v180 = vld [vmem:[#allocation2 + $0x38] sm:$0xff]
    %v181 = vld [vmem:[#allocation2 + $0x40] sm:$0xff]
    %v182 = vld [vmem:[#allocation2 + $0x48] sm:$0xff]
    %v183 = vld [vmem:[#allocation2 + $0x50] sm:$0xff]
    %v184 = vld [vmem:[#allocation2 + $0x58] sm:$0xff]
    %v185 = vld [vmem:[#allocation2 + $0x60] sm:$0xff]
    %v186 = vld [vmem:[#allocation2 + $0x68] sm:$0xff]
    %v187 = vld [vmem:[#allocation2 + $0x70] sm:$0xff]
    %v188 = vld [vmem:[#allocation2 + $0x78] sm:$0xff]
    %v189 = vld [vmem:[#allocation3] sm:$0xff]
    %v190 = vld [vmem:[#allocation3 + $0x8] sm:$0xff]
    %v191 = vld [vmem:[#allocation3 + $0x10] sm:$0xff]
    %v192 = vld [vmem:[#allocation3 + $0x18] sm:$0xff]
    %v193 = vld [vmem:[#allocation3 + $0x20] sm:$0xff]
    %v194 = vld [vmem:[#allocation3 + $0x28] sm:$0xff]
    %v195 = vld [vmem:[#allocation3 + $0x30] sm:$0xff]
    %v196 = vld [vmem:[#allocation3 + $0x38] sm:$0xff]
    %v197 = vld [vmem:[#allocation3 + $0x40] sm:$0xff]
    %v198 = vld [vmem:[#allocation3 + $0x48] sm:$0xff]
    %v199 = vld [vmem:[#allocation3 + $0x50] sm:$0xff]
    %v200 = vld [vmem:[#allocation3 + $0x58] sm:$0xff]
    %v201 = vld [vmem:[#allocation3 + $0x60] sm:$0xff]
    %v202 = vld [vmem:[#allocation3 + $0x68] sm:$0xff]
    %v203 = vld [vmem:[#allocation3 + $0x70] sm:$0xff]
    %v204 = vld [vmem:[#allocation3 + $0x78] sm:$0xff]
    %v205 = vshll.u32 %v173, 16
    %v206 = vshll.u32 %v174, 16
    %v207 = vshll.u32 %v175, 16
    %v208 = vshll.u32 %v176, 16
    %v209 = vshll.u32 %v177, 16
    %v210 = vshll.u32 %v178, 16
    %v211 = vshll.u32 %v179, 16
    %v212 = vshll.u32 %v180, 16
    %v213 = vshll.u32 %v181, 16
    %v214 = vshll.u32 %v182, 16
    %v215 = vshll.u32 %v183, 16
    %v216 = vshll.u32 %v184, 16
    %v217 = vshll.u32 %v185, 16
    %v218 = vshll.u32 %v186, 16
    %v219 = vshll.u32 %v187, 16
    %v220 = vshll.u32 %v188, 16
    %v237 = vshll.u32 %v189, 16
    %v238 = vshll.u32 %v190, 16
    %v239 = vshll.u32 %v191, 16
    %v240 = vshll.u32 %v192, 16
    %v241 = vshll.u32 %v193, 16
    %v242 = vshll.u32 %v194, 16
    %v243 = vshll.u32 %v195, 16
    %v244 = vshll.u32 %v196, 16
    %v245 = vshll.u32 %v197, 16
    %v246 = vshll.u32 %v198, 16
    %v247 = vshll.u32 %v199, 16
    %v248 = vshll.u32 %v200, 16
    %v249 = vshll.u32 %v201, 16
    %v250 = vshll.u32 %v202, 16
    %v251 = vshll.u32 %v203, 16
    %v252 = vshll.u32 %v204, 16
    %v269 = vand.u32 %v173, 4294901760
    %v270 = vand.u32 %v174, 4294901760
    %v271 = vand.u32 %v175, 4294901760
    %v272 = vand.u32 %v176, 4294901760
    %v273 = vand.u32 %v177, 4294901760
    %v274 = vand.u32 %v178, 4294901760
    %v275 = vand.u32 %v179, 4294901760
    %v276 = vand.u32 %v180, 4294901760
    %v277 = vand.u32 %v181, 4294901760
    %v278 = vand.u32 %v182, 4294901760
    %v279 = vand.u32 %v183, 4294901760
    %v280 = vand.u32 %v184, 4294901760
    %v281 = vand.u32 %v185, 4294901760
    %v282 = vand.u32 %v186, 4294901760
    %v283 = vand.u32 %v187, 4294901760
    %v284 = vand.u32 %v188, 4294901760
    %v301 = vand.u32 %v189, 4294901760
    %v302 = vand.u32 %v190, 4294901760
    %v303 = vand.u32 %v191, 4294901760
    %v304 = vand.u32 %v192, 4294901760
    %v305 = vand.u32 %v193, 4294901760
    %v306 = vand.u32 %v194, 4294901760
    %v307 = vand.u32 %v195, 4294901760
    %v308 = vand.u32 %v196, 4294901760
    %v309 = vand.u32 %v197, 4294901760
    %v310 = vand.u32 %v198, 4294901760
    %v311 = vand.u32 %v199, 4294901760
    %v312 = vand.u32 %v200, 4294901760
    %v313 = vand.u32 %v201, 4294901760
    %v314 = vand.u32 %v202, 4294901760
    %v315 = vand.u32 %v203, 4294901760
    %v316 = vand.u32 %v204, 4294901760
    %v333 = vpack.c.bf16 %v270, %v269
    %v334 = vpack.c.bf16 %v272, %v271
    %v335 = vpack.c.bf16 %v274, %v273
    %v336 = vpack.c.bf16 %v276, %v275
    %v337 = vpack.c.bf16 %v278, %v277
    %v338 = vpack.c.bf16 %v280, %v279
    %v339 = vpack.c.bf16 %v282, %v281
    %v340 = vpack.c.bf16 %v284, %v283
    %v341 = vld [vmem:[%s4] sm:$0xf]
    %v342 = vld [vmem:[%s4 + $0x4] sm:$0xf]
    %v343 = vld [vmem:[%s4 + $0x8] sm:$0xf]
    %v344 = vld [vmem:[%s4 + $0xc] sm:$0xf]
    %v345 = vpack.c.bf16 %v302, %v301
    %v346 = vpack.c.bf16 %v304, %v303
    %v347 = vpack.c.bf16 %v306, %v305
    %v348 = vpack.c.bf16 %v308, %v307
    %v349 = vpack.c.bf16 %v310, %v309
    %v350 = vpack.c.bf16 %v312, %v311
    %v351 = vpack.c.bf16 %v314, %v313
    %v352 = vpack.c.bf16 %v316, %v315
    %v353 = vld [vmem:[#allocation8] sm:$0xf]
    %v354 = vld [vmem:[#allocation8 + $0x4] sm:$0xf]
    %v355 = vld [vmem:[#allocation8 + $0x8] sm:$0xf]
    %v356 = vld [vmem:[#allocation8 + $0xc] sm:$0xf]
    %v361 = vunpack.c.l.b16 %v353
    %v362 = vunpack.c.l.b16 %v354
    %v363 = vunpack.c.l.b16 %v355
    %v364 = vunpack.c.l.b16 %v356
    %v365 = vpack.c.b16 %v362, %v361
    %v366 = vpack.c.b16 %v364, %v363
    %vm369 = vcmask 261120
    %v371 = vsel %vm369, %v345, 0
    %v374 = vsel %vm369, %v346, 0
    %v377 = vsel %vm369, %v347, 0
    %v380 = vsel %vm369, %v348, 0
    %v383 = vsel %vm369, %v349, 0
    %v386 = vsel %vm369, %v350, 0
    %v389 = vsel %vm369, %v351, 0
    %v392 = vsel %vm369, %v352, 0
    %394 = vmatprep.subr.bf16.mxu0 0
    %395 = vmatpush1.bf16.msra.mxu0 0
    %396 = vmatprep.subr.bf16.mxu0 0
    %397 = vmatpush1.bf16.msra.mxu0 0
    %398 = vmatprep.subr.bf16.mxu0 0
    %399 = vmatpush1.bf16.msra.mxu0 0
    %400 = vmatprep.subr.bf16.mxu0 0
    %401 = vmatpush1.bf16.msra.mxu0 0
    %402 = vmatprep.subr.bf16.mxu0 0
    %403 = vmatpush1.bf16.msra.mxu0 0
    %404 = vmatprep.subr.bf16.mxu0 0
    %405 = vmatpush1.bf16.msra.mxu0 0
    %406 = vmatprep.subr.bf16.mxu0 0
    %407 = vmatpush1.bf16.msra.mxu0 %v366
    %408 = vmatprep.subr.bf16.mxu0 0
    %409 = vmatpush1.bf16.msra.mxu0 %v365
    %410 = vmatprep.subr.bf16.mxu0 0
    %411 = vmatpush2.bf16.msra.mxu0 0
    %412 = vmatprep.subr.bf16.mxu0 0
    %413 = vmatpush2.bf16.msra.mxu0 0
    %414 = vmatprep.subr.bf16.mxu0 0
    %415 = vmatpush2.bf16.msra.mxu0 0
    %416 = vmatprep.subr.bf16.mxu0 0
    %417 = vmatpush2.bf16.msra.mxu0 0
    %418 = vmatprep.subr.bf16.mxu0 0
    %419 = vmatpush2.bf16.msra.mxu0 0
    %420 = vmatprep.subr.bf16.mxu0 0
    %421 = vmatpush2.bf16.msra.mxu0 0
    %422 = vmatprep.subr.bf16.mxu0 0
    %423 = vmatpush2.bf16.msra.mxu0 0
    %424 = vmatprep.subr.bf16.mxu0 0
    %425 = vmatpush2.bf16.msra.mxu0 0
    %426 = vmatprep.mubr.bf16.mxu0 0
    %427 = vmatmul.mubr.bf16.gmra.mxu0 %v371
    %v428 = vpop.f32.mrf.mxu0
    %v429 = vadd.f32 0.0, %v428
    %v430 = vpop.f32.mrf.mxu0
    %v431 = vpop.f32.mrf.mxu0
    %v432 = vadd.f32 0.0, %v431
    %v433 = vpop.f32.mrf.mxu0
    %434 = vmatprep.mubr.bf16.mxu0 0
    %435 = vmatmul.mubr.bf16.gmra.mxu0 %v374
    %v436 = vpop.f32.mrf.mxu0
    %v437 = vadd.f32 0.0, %v436
    %v438 = vpop.f32.mrf.mxu0
    %v439 = vpop.f32.mrf.mxu0
    %v440 = vadd.f32 0.0, %v439
    %v441 = vpop.f32.mrf.mxu0
    %442 = vmatprep.mubr.bf16.mxu0 0
    %443 = vmatmul.mubr.bf16.gmra.mxu0 %v377
    %v444 = vpop.f32.mrf.mxu0
    %v445 = vadd.f32 0.0, %v444
    %v446 = vpop.f32.mrf.mxu0
    %v447 = vpop.f32.mrf.mxu0
    %v448 = vadd.f32 0.0, %v447
    %v449 = vpop.f32.mrf.mxu0
    %450 = vmatprep.mubr.bf16.mxu0 0
    %451 = vmatmul.mubr.bf16.gmra.mxu0 %v380
    %v452 = vpop.f32.mrf.mxu0
    %v453 = vadd.f32 0.0, %v452
    %v454 = vpop.f32.mrf.mxu0
    %v455 = vpop.f32.mrf.mxu0
    %v456 = vadd.f32 0.0, %v455
    %v457 = vpop.f32.mrf.mxu0
    %458 = vmatprep.mubr.bf16.mxu0 0
    %459 = vmatmul.mubr.bf16.gmra.mxu0 %v383
    %v460 = vpop.f32.mrf.mxu0
    %v461 = vadd.f32 0.0, %v460
    %v462 = vpop.f32.mrf.mxu0
    %v463 = vpop.f32.mrf.mxu0
    %v464 = vadd.f32 0.0, %v463
    %v465 = vpop.f32.mrf.mxu0
    %466 = vmatprep.mubr.bf16.mxu0 0
    %467 = vmatmul.mubr.bf16.gmra.mxu0 %v386
    %v468 = vpop.f32.mrf.mxu0
    %v469 = vadd.f32 0.0, %v468
    %v470 = vpop.f32.mrf.mxu0
    %v471 = vpop.f32.mrf.mxu0
    %v472 = vadd.f32 0.0, %v471
    %v473 = vpop.f32.mrf.mxu0
    %474 = vmatprep.mubr.bf16.mxu0 0
    %475 = vmatmul.mubr.bf16.gmra.mxu0 %v389
    %v476 = vpop.f32.mrf.mxu0
    %v477 = vadd.f32 0.0, %v476
    %v478 = vpop.f32.mrf.mxu0
    %v479 = vpop.f32.mrf.mxu0
    %v480 = vadd.f32 0.0, %v479
    %v481 = vpop.f32.mrf.mxu0
    %482 = vmatprep.mubr.bf16.mxu0 0
    %483 = vmatmul.mubr.bf16.gmra.mxu0 %v392
    %v484 = vpop.f32.mrf.mxu0
    %v485 = vadd.f32 0.0, %v484
    %v486 = vpop.f32.mrf.mxu0
    %v487 = vpop.f32.mrf.mxu0
    %v488 = vadd.f32 0.0, %v487
    %v489 = vpop.f32.mrf.mxu0
    %490 = vdwg.mxu0
    %v495 = vunpack.c.l.b16 %v341
    %v496 = vunpack.c.l.b16 %v342
    %v497 = vunpack.c.l.b16 %v343
    %v498 = vunpack.c.l.b16 %v344
    %v499 = vpack.c.b16 %v496, %v495
    %v500 = vpack.c.b16 %v498, %v497
    %v504 = vsel %vm369, %v333, 0
    %v507 = vsel %vm369, %v334, 0
    %v510 = vsel %vm369, %v335, 0
    %v513 = vsel %vm369, %v336, 0
    %v516 = vsel %vm369, %v337, 0
    %v519 = vsel %vm369, %v338, 0
    %v522 = vsel %vm369, %v339, 0
    %v525 = vsel %vm369, %v340, 0
    %527 = vmatprep.subr.bf16.mxu0 0
    %528 = vmatpush1.bf16.msra.mxu0 0
    %529 = vmatprep.subr.bf16.mxu0 0
    %530 = vmatpush1.bf16.msra.mxu0 0
    %531 = vmatprep.subr.bf16.mxu0 0
    %532 = vmatpush1.bf16.msra.mxu0 0
    %533 = vmatprep.subr.bf16.mxu0 0
    %534 = vmatpush1.bf16.msra.mxu0 0
    %535 = vmatprep.subr.bf16.mxu0 0
    %536 = vmatpush1.bf16.msra.mxu0 0
    %537 = vmatprep.subr.bf16.mxu0 0
    %538 = vmatpush1.bf16.msra.mxu0 0
    %539 = vmatprep.subr.bf16.mxu0 0
    %540 = vmatpush1.bf16.msra.mxu0 %v500
    %541 = vmatprep.subr.bf16.mxu0 0
    %542 = vmatpush1.bf16.msra.mxu0 %v499
    %543 = vmatprep.subr.bf16.mxu0 0
    %544 = vmatpush2.bf16.msra.mxu0 0
    %545 = vmatprep.subr.bf16.mxu0 0
    %546 = vmatpush2.bf16.msra.mxu0 0
    %547 = vmatprep.subr.bf16.mxu0 0
    %548 = vmatpush2.bf16.msra.mxu0 0
    %549 = vmatprep.subr.bf16.mxu0 0
    %550 = vmatpush2.bf16.msra.mxu0 0
    %551 = vmatprep.subr.bf16.mxu0 0
    %552 = vmatpush2.bf16.msra.mxu0 0
    %553 = vmatprep.subr.bf16.mxu0 0
    %554 = vmatpush2.bf16.msra.mxu0 0
    %555 = vmatprep.subr.bf16.mxu0 0
    %556 = vmatpush2.bf16.msra.mxu0 0
    %557 = vmatprep.subr.bf16.mxu0 0
    %558 = vmatpush2.bf16.msra.mxu0 0
    %559 = vmatprep.mubr.bf16.mxu0 0
    %560 = vmatmul.mubr.bf16.gmra.mxu0 %v504
    %v561 = vpop.f32.mrf.mxu0
    %v562 = vadd.f32 %v429, %v561
    %v563 = vpop.f32.mrf.mxu0
    %v564 = vpop.f32.mrf.mxu0
    %v565 = vadd.f32 %v432, %v564
    %v566 = vpop.f32.mrf.mxu0
    %567 = vmatprep.mubr.bf16.mxu0 0
    %568 = vmatmul.mubr.bf16.gmra.mxu0 %v507
    %v569 = vpop.f32.mrf.mxu0
    %v570 = vadd.f32 %v437, %v569
    %v571 = vpop.f32.mrf.mxu0
    %v572 = vpop.f32.mrf.mxu0
    %v573 = vadd.f32 %v440, %v572
    %v574 = vpop.f32.mrf.mxu0
    %575 = vmatprep.mubr.bf16.mxu0 0
    %576 = vmatmul.mubr.bf16.gmra.mxu0 %v510
    %v577 = vpop.f32.mrf.mxu0
    %v578 = vadd.f32 %v445, %v577
    %v579 = vpop.f32.mrf.mxu0
    %v580 = vpop.f32.mrf.mxu0
    %v581 = vadd.f32 %v448, %v580
    %v582 = vpop.f32.mrf.mxu0
    %583 = vmatprep.mubr.bf16.mxu0 0
    %584 = vmatmul.mubr.bf16.gmra.mxu0 %v513
    %v585 = vpop.f32.mrf.mxu0
    %v586 = vadd.f32 %v453, %v585
    %v587 = vpop.f32.mrf.mxu0
    %v588 = vpop.f32.mrf.mxu0
    %v589 = vadd.f32 %v456, %v588
    %v590 = vpop.f32.mrf.mxu0
    %591 = vmatprep.mubr.bf16.mxu0 0
    %592 = vmatmul.mubr.bf16.gmra.mxu0 %v516
    %v593 = vpop.f32.mrf.mxu0
    %v594 = vadd.f32 %v461, %v593
    %v595 = vpop.f32.mrf.mxu0
    %v596 = vpop.f32.mrf.mxu0
    %v597 = vadd.f32 %v464, %v596
    %v598 = vpop.f32.mrf.mxu0
    %599 = vmatprep.mubr.bf16.mxu0 0
    %600 = vmatmul.mubr.bf16.gmra.mxu0 %v519
    %v601 = vpop.f32.mrf.mxu0
    %v602 = vadd.f32 %v469, %v601
    %v603 = vpop.f32.mrf.mxu0
    %v604 = vpop.f32.mrf.mxu0
    %v605 = vadd.f32 %v472, %v604
    %v606 = vpop.f32.mrf.mxu0
    %607 = vmatprep.mubr.bf16.mxu0 0
    %608 = vmatmul.mubr.bf16.gmra.mxu0 %v522
    %v609 = vpop.f32.mrf.mxu0
    %v610 = vadd.f32 %v477, %v609
    %v611 = vpop.f32.mrf.mxu0
    %v612 = vpop.f32.mrf.mxu0
    %v613 = vadd.f32 %v480, %v612
    %v614 = vpop.f32.mrf.mxu0
    %615 = vmatprep.mubr.bf16.mxu0 0
    %616 = vmatmul.mubr.bf16.gmra.mxu0 %v525
    %v617 = vpop.f32.mrf.mxu0
    %v618 = vadd.f32 %v485, %v617
    %v619 = vpop.f32.mrf.mxu0
    %v620 = vpop.f32.mrf.mxu0
    %v621 = vadd.f32 %v488, %v620
    %v622 = vpop.f32.mrf.mxu0
    %623 = vdwg.mxu0
    %v624 = vld [vmem:[%s6] sm:$0x1]
    %v626 = vlaneseq
    %v627 = vshrl.u32 %v626, 7
    %v628 = vsub.s32 0, %v627
    %v629 = vrot.slane %v624, %v628
    %v631 = vadd.f32 %v562, %v629
    %v632 = vadd.f32 %v565, %v629
    %v633 = vadd.f32 %v570, %v629
    %v634 = vadd.f32 %v573, %v629
    %v635 = vadd.f32 %v578, %v629
    %v636 = vadd.f32 %v581, %v629
    %v637 = vadd.f32 %v586, %v629
    %v638 = vadd.f32 %v589, %v629
    %v639 = vadd.f32 %v594, %v629
    %v640 = vadd.f32 %v597, %v629
    %v641 = vadd.f32 %v602, %v629
    %v642 = vadd.f32 %v605, %v629
    %v643 = vadd.f32 %v610, %v629
    %v644 = vadd.f32 %v613, %v629
    %v645 = vadd.f32 %v618, %v629
    %v646 = vadd.f32 %v621, %v629
    %vm647 = vcmp.ge.f32.partialorder %v631, 0.0
    %vm648 = vcmp.ge.f32.partialorder %v632, 0.0
    %vm649 = vcmp.ge.f32.partialorder %v633, 0.0
    %vm650 = vcmp.ge.f32.partialorder %v634, 0.0
    %vm651 = vcmp.ge.f32.partialorder %v635, 0.0
    %vm652 = vcmp.ge.f32.partialorder %v636, 0.0
    %vm653 = vcmp.ge.f32.partialorder %v637, 0.0
    %vm654 = vcmp.ge.f32.partialorder %v638, 0.0
    %vm655 = vcmp.ge.f32.partialorder %v639, 0.0
    %vm656 = vcmp.ge.f32.partialorder %v640, 0.0
    %vm657 = vcmp.ge.f32.partialorder %v641, 0.0
    %vm658 = vcmp.ge.f32.partialorder %v642, 0.0
    %vm659 = vcmp.ge.f32.partialorder %v643, 0.0
    %vm660 = vcmp.ge.f32.partialorder %v644, 0.0
    %vm661 = vcmp.ge.f32.partialorder %v645, 0.0
    %vm662 = vcmp.ge.f32.partialorder %v646, 0.0
    %v663 = vmul.f32 %v631, 0.01
    %v664 = vmul.f32 %v632, 0.01
    %v665 = vmul.f32 %v633, 0.01
    %v666 = vmul.f32 %v634, 0.01
    %v667 = vmul.f32 %v635, 0.01
    %v668 = vmul.f32 %v636, 0.01
    %v669 = vmul.f32 %v637, 0.01
    %v670 = vmul.f32 %v638, 0.01
    %v671 = vmul.f32 %v639, 0.01
    %v672 = vmul.f32 %v640, 0.01
    %v673 = vmul.f32 %v641, 0.01
    %v674 = vmul.f32 %v642, 0.01
    %v675 = vmul.f32 %v643, 0.01
    %v676 = vmul.f32 %v644, 0.01
    %v677 = vmul.f32 %v645, 0.01
    %v678 = vmul.f32 %v646, 0.01
    %v679 = vsel %vm647, %v631, %v663
    %v680 = vsel %vm648, %v632, %v664
    %v681 = vsel %vm649, %v633, %v665
    %v682 = vsel %vm650, %v634, %v666
    %v683 = vsel %vm651, %v635, %v667
    %v684 = vsel %vm652, %v636, %v668
    %v685 = vsel %vm653, %v637, %v669
    %v686 = vsel %vm654, %v638, %v670
    %v687 = vsel %vm655, %v639, %v671
    %v688 = vsel %vm656, %v640, %v672
    %v689 = vsel %vm657, %v641, %v673
    %v690 = vsel %vm658, %v642, %v674
    %v691 = vsel %vm659, %v643, %v675
    %v692 = vsel %vm660, %v644, %v676
    %v693 = vsel %vm661, %v645, %v677
    %v694 = vsel %vm662, %v646, %v678
    %v695 = vpack.c.bf16 %v680, %v679
    %v696 = vpack.c.bf16 %v682, %v681
    %v697 = vpack.c.bf16 %v684, %v683
    %v698 = vpack.c.bf16 %v686, %v685
    %v699 = vpack.c.bf16 %v688, %v687
    %v700 = vpack.c.bf16 %v690, %v689
    %v701 = vpack.c.bf16 %v692, %v691
    %v702 = vpack.c.bf16 %v694, %v693
    %v703 = vld [vmem:[%s7] sm:$0xf]
    %v704 = vld [vmem:[%s7 + $0x4] sm:$0xf]
    %v705 = vld [vmem:[%s7 + $0x8] sm:$0xf]
    %v706 = vld [vmem:[%s7 + $0xc] sm:$0xf]
    %v707 = vld [vmem:[%s7 + $0x10] sm:$0xf]
    %v708 = vld [vmem:[%s7 + $0x14] sm:$0xf]
    %v709 = vld [vmem:[%s7 + $0x18] sm:$0xf]
    %v710 = vld [vmem:[%s7 + $0x1c] sm:$0xf]
    %v711 = vld [vmem:[%s8] sm:$0x1]
    %v713 = vlaneseq
    %v714 = vshrl.u32 %v713, 7
    %v715 = vsub.s32 0, %v714
    %v716 = vrot.slane %v711, %v715
    %v726 = vunpack.c.l.b16 %v703
    %v727 = vunpack.c.l.b16 %v704
    %v728 = vunpack.c.l.b16 %v705
    %v729 = vunpack.c.l.b16 %v706
    %v730 = vunpack.c.l.b16 %v707
    %v731 = vunpack.c.l.b16 %v708
    %v732 = vunpack.c.l.b16 %v709
    %v733 = vunpack.c.l.b16 %v710
    %v734 = vpack.c.b16 %v727, %v726
    %v735 = vpack.c.b16 %v729, %v728
    %v736 = vpack.c.b16 %v731, %v730
    %v737 = vpack.c.b16 %v733, %v732
    %vm742 = vcmask 523264
    %v744 = vsel %vm742, %v695, 0
    %v747 = vsel %vm742, %v696, 0
    %v750 = vsel %vm742, %v697, 0
    %v753 = vsel %vm742, %v698, 0
    %v756 = vsel %vm742, %v699, 0
    %v759 = vsel %vm742, %v700, 0
    %v762 = vsel %vm742, %v701, 0
    %v765 = vsel %vm742, %v702, 0
    %767 = vmatprep.subr.bf16.mxu0 0
    %768 = vmatpush1.bf16.msra.mxu0 0
    %769 = vmatprep.subr.bf16.mxu0 0
    %770 = vmatpush1.bf16.msra.mxu0 0
    %771 = vmatprep.subr.bf16.mxu0 0
    %772 = vmatpush1.bf16.msra.mxu0 0
    %773 = vmatprep.subr.bf16.mxu0 0
    %774 = vmatpush1.bf16.msra.mxu0 0
    %775 = vmatprep.subr.bf16.mxu0 0
    %776 = vmatpush1.bf16.msra.mxu0 %v737
    %777 = vmatprep.subr.bf16.mxu0 0
    %778 = vmatpush1.bf16.msra.mxu0 %v736
    %779 = vmatprep.subr.bf16.mxu0 0
    %780 = vmatpush1.bf16.msra.mxu0 %v735
    %781 = vmatprep.subr.bf16.mxu0 0
    %782 = vmatpush1.bf16.msra.mxu0 %v734
    %783 = vmatprep.subr.bf16.mxu0 0
    %784 = vmatpush2.bf16.msra.mxu0 0
    %785 = vmatprep.subr.bf16.mxu0 0
    %786 = vmatpush2.bf16.msra.mxu0 0
    %787 = vmatprep.subr.bf16.mxu0 0
    %788 = vmatpush2.bf16.msra.mxu0 0
    %789 = vmatprep.subr.bf16.mxu0 0
    %790 = vmatpush2.bf16.msra.mxu0 0
    %791 = vmatprep.subr.bf16.mxu0 0
    %792 = vmatpush2.bf16.msra.mxu0 0
    %793 = vmatprep.subr.bf16.mxu0 0
    %794 = vmatpush2.bf16.msra.mxu0 0
    %795 = vmatprep.subr.bf16.mxu0 0
    %796 = vmatpush2.bf16.msra.mxu0 0
    %797 = vmatprep.subr.bf16.mxu0 0
    %798 = vmatpush2.bf16.msra.mxu0 0
    %799 = vmatprep.mubr.bf16.mxu0 0
    %800 = vmatmul.mubr.bf16.gmra.mxu0 %v744
    %v801 = vpop.f32.mrf.mxu0
    %v802 = vadd.f32 %v716, %v801
    %v803 = vpop.f32.mrf.mxu0
    %v804 = vpop.f32.mrf.mxu0
    %v805 = vadd.f32 %v716, %v804
    %v806 = vpop.f32.mrf.mxu0
    %807 = vmatprep.mubr.bf16.mxu0 0
    %808 = vmatmul.mubr.bf16.gmra.mxu0 %v747
    %v809 = vpop.f32.mrf.mxu0
    %v810 = vadd.f32 %v716, %v809
    %v811 = vpop.f32.mrf.mxu0
    %v812 = vpop.f32.mrf.mxu0
    %v813 = vadd.f32 %v716, %v812
    %v814 = vpop.f32.mrf.mxu0
    %815 = vmatprep.mubr.bf16.mxu0 0
    %816 = vmatmul.mubr.bf16.gmra.mxu0 %v750
    %v817 = vpop.f32.mrf.mxu0
    %v818 = vadd.f32 %v716, %v817
    %v819 = vpop.f32.mrf.mxu0
    %v820 = vpop.f32.mrf.mxu0
    %v821 = vadd.f32 %v716, %v820
    %v822 = vpop.f32.mrf.mxu0
    %823 = vmatprep.mubr.bf16.mxu0 0
    %824 = vmatmul.mubr.bf16.gmra.mxu0 %v753
    %v825 = vpop.f32.mrf.mxu0
    %v826 = vadd.f32 %v716, %v825
    %v827 = vpop.f32.mrf.mxu0
    %v828 = vpop.f32.mrf.mxu0
    %v829 = vadd.f32 %v716, %v828
    %v830 = vpop.f32.mrf.mxu0
    %831 = vmatprep.mubr.bf16.mxu0 0
    %832 = vmatmul.mubr.bf16.gmra.mxu0 %v756
    %v833 = vpop.f32.mrf.mxu0
    %v834 = vadd.f32 %v716, %v833
    %v835 = vpop.f32.mrf.mxu0
    %v836 = vpop.f32.mrf.mxu0
    %v837 = vadd.f32 %v716, %v836
    %v838 = vpop.f32.mrf.mxu0
    %839 = vmatprep.mubr.bf16.mxu0 0
    %840 = vmatmul.mubr.bf16.gmra.mxu0 %v759
    %v841 = vpop.f32.mrf.mxu0
    %v842 = vadd.f32 %v716, %v841
    %v843 = vpop.f32.mrf.mxu0
    %v844 = vpop.f32.mrf.mxu0
    %v845 = vadd.f32 %v716, %v844
    %v846 = vpop.f32.mrf.mxu0
    %847 = vmatprep.mubr.bf16.mxu0 0
    %848 = vmatmul.mubr.bf16.gmra.mxu0 %v762
    %v849 = vpop.f32.mrf.mxu0
    %v850 = vadd.f32 %v716, %v849
    %v851 = vpop.f32.mrf.mxu0
    %v852 = vpop.f32.mrf.mxu0
    %v853 = vadd.f32 %v716, %v852
    %v854 = vpop.f32.mrf.mxu0
    %855 = vmatprep.mubr.bf16.mxu0 0
    %856 = vmatmul.mubr.bf16.gmra.mxu0 %v765
    %v857 = vpop.f32.mrf.mxu0
    %v858 = vadd.f32 %v716, %v857
    %v859 = vpop.f32.mrf.mxu0
    %v860 = vpop.f32.mrf.mxu0
    %v861 = vadd.f32 %v716, %v860
    %v862 = vpop.f32.mrf.mxu0
    %863 = vdwg.mxu0
    %vm864 = vcmp.ge.f32.partialorder %v802, 0.0
    %vm865 = vcmp.ge.f32.partialorder %v805, 0.0
    %vm866 = vcmp.ge.f32.partialorder %v810, 0.0
    %vm867 = vcmp.ge.f32.partialorder %v813, 0.0
    %vm868 = vcmp.ge.f32.partialorder %v818, 0.0
    %vm869 = vcmp.ge.f32.partialorder %v821, 0.0
    %vm870 = vcmp.ge.f32.partialorder %v826, 0.0
    %vm871 = vcmp.ge.f32.partialorder %v829, 0.0
    %vm872 = vcmp.ge.f32.partialorder %v834, 0.0
    %vm873 = vcmp.ge.f32.partialorder %v837, 0.0
    %vm874 = vcmp.ge.f32.partialorder %v842, 0.0
    %vm875 = vcmp.ge.f32.partialorder %v845, 0.0
    %vm876 = vcmp.ge.f32.partialorder %v850, 0.0
    %vm877 = vcmp.ge.f32.partialorder %v853, 0.0
    %vm878 = vcmp.ge.f32.partialorder %v858, 0.0
    %vm879 = vcmp.ge.f32.partialorder %v861, 0.0
    %v880 = vmul.f32 %v802, 0.01
    %v881 = vmul.f32 %v805, 0.01
    %v882 = vmul.f32 %v810, 0.01
    %v883 = vmul.f32 %v813, 0.01
    %v884 = vmul.f32 %v818, 0.01
    %v885 = vmul.f32 %v821, 0.01
    %v886 = vmul.f32 %v826, 0.01
    %v887 = vmul.f32 %v829, 0.01
    %v888 = vmul.f32 %v834, 0.01
    %v889 = vmul.f32 %v837, 0.01
    %v890 = vmul.f32 %v842, 0.01
    %v891 = vmul.f32 %v845, 0.01
    %v892 = vmul.f32 %v850, 0.01
    %v893 = vmul.f32 %v853, 0.01
    %v894 = vmul.f32 %v858, 0.01
    %v895 = vmul.f32 %v861, 0.01
    %v896 = vsel %vm864, %v802, %v880
    %v897 = vsel %vm865, %v805, %v881
    %v898 = vsel %vm866, %v810, %v882
    %v899 = vsel %vm867, %v813, %v883
    %v900 = vsel %vm868, %v818, %v884
    %v901 = vsel %vm869, %v821, %v885
    %v902 = vsel %vm870, %v826, %v886
    %v903 = vsel %vm871, %v829, %v887
    %v904 = vsel %vm872, %v834, %v888
    %v905 = vsel %vm873, %v837, %v889
    %v906 = vsel %vm874, %v842, %v890
    %v907 = vsel %vm875, %v845, %v891
    %v908 = vsel %vm876, %v850, %v892
    %v909 = vsel %vm877, %v853, %v893
    %v910 = vsel %vm878, %v858, %v894
    %v911 = vsel %vm879, %v861, %v895
    %v912 = vmul.f32 %v205, %v237
    %v913 = vmul.f32 %v206, %v238
    %v914 = vmul.f32 %v207, %v239
    %v915 = vmul.f32 %v208, %v240
    %v916 = vmul.f32 %v209, %v241
    %v917 = vmul.f32 %v210, %v242
    %v918 = vmul.f32 %v211, %v243
    %v919 = vmul.f32 %v212, %v244
    %v920 = vmul.f32 %v213, %v245
    %v921 = vmul.f32 %v214, %v246
    %v922 = vmul.f32 %v215, %v247
    %v923 = vmul.f32 %v216, %v248
    %v924 = vmul.f32 %v217, %v249
    %v925 = vmul.f32 %v218, %v250
    %v926 = vmul.f32 %v219, %v251
    %v927 = vmul.f32 %v220, %v252
    %v928 = vld [vmem:[%s9] sm:$0x1]
    %v930 = vlaneseq
    %v931 = vshrl.u32 %v930, 7
    %v932 = vsub.s32 0, %v931
    %v933 = vrot.slane %v928, %v932
    %v935 = vmul.f32 %v912, %v933
    %v936 = vmul.f32 %v913, %v933
    %v937 = vmul.f32 %v914, %v933
    %v938 = vmul.f32 %v915, %v933
    %v939 = vmul.f32 %v916, %v933
    %v940 = vmul.f32 %v917, %v933
    %v941 = vmul.f32 %v918, %v933
    %v942 = vmul.f32 %v919, %v933
    %v943 = vmul.f32 %v920, %v933
    %v944 = vmul.f32 %v921, %v933
    %v945 = vmul.f32 %v922, %v933
    %v946 = vmul.f32 %v923, %v933
    %v947 = vmul.f32 %v924, %v933
    %v948 = vmul.f32 %v925, %v933
    %v949 = vmul.f32 %v926, %v933
    %v950 = vmul.f32 %v927, %v933
    %v951 = vsel %vm369, %v935, 0.0
    %952 = vadd.xlane.f32.xlu0 %v951
    %v953 = vpop.xlane.xlu0 %952
    %v954 = vsel %vm369, %v936, 0.0
    %955 = vadd.xlane.f32.xlu0 %v954
    %v956 = vpop.xlane.xlu0 %955
    %v957 = vsel %vm369, %v937, 0.0
    %958 = vadd.xlane.f32.xlu0 %v957
    %v959 = vpop.xlane.xlu0 %958
    %v960 = vsel %vm369, %v938, 0.0
    %961 = vadd.xlane.f32.xlu0 %v960
    %v962 = vpop.xlane.xlu0 %961
    %v963 = vsel %vm369, %v939, 0.0
    %964 = vadd.xlane.f32.xlu0 %v963
    %v965 = vpop.xlane.xlu0 %964
    %v966 = vsel %vm369, %v940, 0.0
    %967 = vadd.xlane.f32.xlu0 %v966
    %v968 = vpop.xlane.xlu0 %967
    %v969 = vsel %vm369, %v941, 0.0
    %970 = vadd.xlane.f32.xlu0 %v969
    %v971 = vpop.xlane.xlu0 %970
    %v972 = vsel %vm369, %v942, 0.0
    %973 = vadd.xlane.f32.xlu0 %v972
    %v974 = vpop.xlane.xlu0 %973
    %v975 = vsel %vm369, %v943, 0.0
    %976 = vadd.xlane.f32.xlu0 %v975
    %v977 = vpop.xlane.xlu0 %976
    %v978 = vsel %vm369, %v944, 0.0
    %979 = vadd.xlane.f32.xlu0 %v978
    %v980 = vpop.xlane.xlu0 %979
    %v981 = vsel %vm369, %v945, 0.0
    %982 = vadd.xlane.f32.xlu0 %v981
    %v983 = vpop.xlane.xlu0 %982
    %v984 = vsel %vm369, %v946, 0.0
    %985 = vadd.xlane.f32.xlu0 %v984
    %v986 = vpop.xlane.xlu0 %985
    %v987 = vsel %vm369, %v947, 0.0
    %988 = vadd.xlane.f32.xlu0 %v987
    %v989 = vpop.xlane.xlu0 %988
    %v990 = vsel %vm369, %v948, 0.0
    %991 = vadd.xlane.f32.xlu0 %v990
    %v992 = vpop.xlane.xlu0 %991
    %v993 = vsel %vm369, %v949, 0.0
    %994 = vadd.xlane.f32.xlu0 %v993
    %v995 = vpop.xlane.xlu0 %994
    %v996 = vsel %vm369, %v950, 0.0
    %997 = vadd.xlane.f32.xlu0 %v996
    %v998 = vpop.xlane.xlu0 %997
    %v999 = vld [vmem:[%s10] sm:$0x1]
    %v1001 = vlaneseq
    %v1002 = vshrl.u32 %v1001, 7
    %v1003 = vsub.s32 0, %v1002
    %v1004 = vrot.slane %v999, %v1003
    %v1006 = vmul.f32 %v896, %v1004
    %v1007 = vmul.f32 %v897, %v1004
    %v1008 = vmul.f32 %v898, %v1004
    %v1009 = vmul.f32 %v899, %v1004
    %v1010 = vmul.f32 %v900, %v1004
    %v1011 = vmul.f32 %v901, %v1004
    %v1012 = vmul.f32 %v902, %v1004
    %v1013 = vmul.f32 %v903, %v1004
    %v1014 = vmul.f32 %v904, %v1004
    %v1015 = vmul.f32 %v905, %v1004
    %v1016 = vmul.f32 %v906, %v1004
    %v1017 = vmul.f32 %v907, %v1004
    %v1018 = vmul.f32 %v908, %v1004
    %v1019 = vmul.f32 %v909, %v1004
    %v1020 = vmul.f32 %v910, %v1004
    %v1021 = vmul.f32 %v911, %v1004
    %v1022 = vsel %vm369, %v1006, 0.0
    %1023 = vadd.xlane.f32.xlu0 %v1022
    %v1024 = vpop.xlane.xlu0 %1023
    %v1025 = vsel %vm369, %v1007, 0.0
    %1026 = vadd.xlane.f32.xlu0 %v1025
    %v1027 = vpop.xlane.xlu0 %1026
    %v1028 = vsel %vm369, %v1008, 0.0
    %1029 = vadd.xlane.f32.xlu0 %v1028
    %v1030 = vpop.xlane.xlu0 %1029
    %v1031 = vsel %vm369, %v1009, 0.0
    %1032 = vadd.xlane.f32.xlu0 %v1031
    %v1033 = vpop.xlane.xlu0 %1032
    %v1034 = vsel %vm369, %v1010, 0.0
    %1035 = vadd.xlane.f32.xlu0 %v1034
    %v1036 = vpop.xlane.xlu0 %1035
    %v1037 = vsel %vm369, %v1011, 0.0
    %1038 = vadd.xlane.f32.xlu0 %v1037
    %v1039 = vpop.xlane.xlu0 %1038
    %v1040 = vsel %vm369, %v1012, 0.0
    %1041 = vadd.xlane.f32.xlu0 %v1040
    %v1042 = vpop.xlane.xlu0 %1041
    %v1043 = vsel %vm369, %v1013, 0.0
    %1044 = vadd.xlane.f32.xlu0 %v1043
    %v1045 = vpop.xlane.xlu0 %1044
    %v1046 = vsel %vm369, %v1014, 0.0
    %1047 = vadd.xlane.f32.xlu0 %v1046
    %v1048 = vpop.xlane.xlu0 %1047
    %v1049 = vsel %vm369, %v1015, 0.0
    %1050 = vadd.xlane.f32.xlu0 %v1049
    %v1051 = vpop.xlane.xlu0 %1050
    %v1052 = vsel %vm369, %v1016, 0.0
    %1053 = vadd.xlane.f32.xlu0 %v1052
    %v1054 = vpop.xlane.xlu0 %1053
    %v1055 = vsel %vm369, %v1017, 0.0
    %1056 = vadd.xlane.f32.xlu0 %v1055
    %v1057 = vpop.xlane.xlu0 %1056
    %v1058 = vsel %vm369, %v1018, 0.0
    %1059 = vadd.xlane.f32.xlu0 %v1058
    %v1060 = vpop.xlane.xlu0 %1059
    %v1061 = vsel %vm369, %v1019, 0.0
    %1062 = vadd.xlane.f32.xlu0 %v1061
    %v1063 = vpop.xlane.xlu0 %1062
    %v1064 = vsel %vm369, %v1020, 0.0
    %1065 = vadd.xlane.f32.xlu0 %v1064
    %v1066 = vpop.xlane.xlu0 %1065
    %v1067 = vsel %vm369, %v1021, 0.0
    %1068 = vadd.xlane.f32.xlu0 %v1067
    %v1069 = vpop.xlane.xlu0 %1068
    %v1070 = vadd.f32 %v953, %v1024
    %v1071 = vadd.f32 %v956, %v1027
    %v1072 = vadd.f32 %v959, %v1030
    %v1073 = vadd.f32 %v962, %v1033
    %v1074 = vadd.f32 %v965, %v1036
    %v1075 = vadd.f32 %v968, %v1039
    %v1076 = vadd.f32 %v971, %v1042
    %v1077 = vadd.f32 %v974, %v1045
    %v1078 = vadd.f32 %v977, %v1048
    %v1079 = vadd.f32 %v980, %v1051
    %v1080 = vadd.f32 %v983, %v1054
    %v1081 = vadd.f32 %v986, %v1057
    %v1082 = vadd.f32 %v989, %v1060
    %v1083 = vadd.f32 %v992, %v1063
    %v1084 = vadd.f32 %v995, %v1066
    %v1085 = vadd.f32 %v998, %v1069
    %v1102 = vlaneseq
    %v1103 = vand.u32 %v1102, 127
    %v1104 = vlaneseq
    %v1105 = vshrl.u32 %v1104, 7
    %v1106 = vsub.s32 %v1103, %v1105
    %v1107 = vrot.slane %v1070, %v1106
    %v1108 = vadd.s32 %v1103, 4294967288
    %v1109 = vlaneseq
    %v1110 = vshrl.u32 %v1109, 7
    %v1111 = vsub.s32 %v1108, %v1110
    %v1112 = vrot.slane %v1071, %v1111
    %vm1113 = vcmask 130112
    %v1114 = vsel %vm1113, %v1112, %v1107
    %v1115 = vadd.s32 %v1103, 4294967280
    %v1116 = vlaneseq
    %v1117 = vshrl.u32 %v1116, 7
    %v1118 = vsub.s32 %v1115, %v1117
    %v1119 = vrot.slane %v1072, %v1118
    %vm1120 = vcmask 195712
    %v1121 = vsel %vm1120, %v1119, %v1114
    %v1122 = vadd.s32 %v1103, 4294967272
    %v1123 = vlaneseq
    %v1124 = vshrl.u32 %v1123, 7
    %v1125 = vsub.s32 %v1122, %v1124
    %v1126 = vrot.slane %v1073, %v1125
    %vm1127 = vcmask 261312
    %v1128 = vsel %vm1127, %v1126, %v1121
    %v1129 = vadd.s32 %v1103, 4294967264
    %v1130 = vlaneseq
    %v1131 = vshrl.u32 %v1130, 7
    %v1132 = vsub.s32 %v1129, %v1131
    %v1133 = vrot.slane %v1074, %v1132
    %vm1134 = vcmask 326912
    %v1135 = vsel %vm1134, %v1133, %v1128
    %v1136 = vadd.s32 %v1103, 4294967256
    %v1137 = vlaneseq
    %v1138 = vshrl.u32 %v1137, 7
    %v1139 = vsub.s32 %v1136, %v1138
    %v1140 = vrot.slane %v1075, %v1139
    %vm1141 = vcmask 392512
    %v1142 = vsel %vm1141, %v1140, %v1135
    %v1143 = vadd.s32 %v1103, 4294967248
    %v1144 = vlaneseq
    %v1145 = vshrl.u32 %v1144, 7
    %v1146 = vsub.s32 %v1143, %v1145
    %v1147 = vrot.slane %v1076, %v1146
    %vm1148 = vcmask 458112
    %v1149 = vsel %vm1148, %v1147, %v1142
    %v1150 = vadd.s32 %v1103, 4294967240
    %v1151 = vlaneseq
    %v1152 = vshrl.u32 %v1151, 7
    %v1153 = vsub.s32 %v1150, %v1152
    %v1154 = vrot.slane %v1077, %v1153
    %vm1155 = vcmask 523712
    %v1156 = vsel %vm1155, %v1154, %v1149
    %v1157 = vadd.s32 %v1103, 4294967232
    %v1158 = vlaneseq
    %v1159 = vshrl.u32 %v1158, 7
    %v1160 = vsub.s32 %v1157, %v1159
    %v1161 = vrot.slane %v1078, %v1160
    %vm1162 = vcmask 589312
    %v1163 = vsel %vm1162, %v1161, %v1156
    %v1164 = vadd.s32 %v1103, 4294967224
    %v1165 = vlaneseq
    %v1166 = vshrl.u32 %v1165, 7
    %v1167 = vsub.s32 %v1164, %v1166
    %v1168 = vrot.slane %v1079, %v1167
    %vm1169 = vcmask 654912
    %v1170 = vsel %vm1169, %v1168, %v1163
    %v1171 = vadd.s32 %v1103, 4294967216
    %v1172 = vlaneseq
    %v1173 = vshrl.u32 %v1172, 7
    %v1174 = vsub.s32 %v1171, %v1173
    %v1175 = vrot.slane %v1080, %v1174
    %vm1176 = vcmask 720512
    %v1177 = vsel %vm1176, %v1175, %v1170
    %v1178 = vadd.s32 %v1103, 4294967208
    %v1179 = vlaneseq
    %v1180 = vshrl.u32 %v1179, 7
    %v1181 = vsub.s32 %v1178, %v1180
    %v1182 = vrot.slane %v1081, %v1181
    %vm1183 = vcmask 786112
    %v1184 = vsel %vm1183, %v1182, %v1177
    %v1185 = vadd.s32 %v1103, 4294967200
    %v1186 = vlaneseq
    %v1187 = vshrl.u32 %v1186, 7
    %v1188 = vsub.s32 %v1185, %v1187
    %v1189 = vrot.slane %v1082, %v1188
    %vm1190 = vcmask 851712
    %v1191 = vsel %vm1190, %v1189, %v1184
    %v1192 = vadd.s32 %v1103, 4294967192
    %v1193 = vlaneseq
    %v1194 = vshrl.u32 %v1193, 7
    %v1195 = vsub.s32 %v1192, %v1194
    %v1196 = vrot.slane %v1083, %v1195
    %vm1197 = vcmask 917312
    %v1198 = vsel %vm1197, %v1196, %v1191
    %v1199 = vadd.s32 %v1103, 4294967184
    %v1200 = vlaneseq
    %v1201 = vshrl.u32 %v1200, 7
    %v1202 = vsub.s32 %v1199, %v1201
    %v1203 = vrot.slane %v1084, %v1202
    %vm1204 = vcmask 982912
    %v1205 = vsel %vm1204, %v1203, %v1198
    %v1206 = vadd.s32 %v1103, 4294967176
    %v1207 = vlaneseq
    %v1208 = vshrl.u32 %v1207, 7
    %v1209 = vsub.s32 %v1206, %v1208
    %v1210 = vrot.slane %v1085, %v1209
    %vm1211 = vcmask 1048512
    %v1212 = vsel %vm1211, %v1210, %v1205
    %1214 = vst [vmem:[%s11] sm:$0x1] %v1212
    // Predicated region
    $region108: #{_neumf_pallas.1} parent=1 // pred_check
      _
    $region109: #{_neumf_pallas.1} parent=1 // pred_check_branch
      %1216 = sbr.rel (0) target = $region111
    $region110: #{_neumf_pallas.1} parent=1 // pred_region
      _
    $region111: #{_neumf_pallas.1} parent=1 // pred_fallthru
      _
    // Predicated region
    $region112: #{_neumf_pallas.1} parent=1 // pred_check
      _
    $region113: #{_neumf_pallas.1} parent=1 // pred_check_branch
      %1218 = sbr.rel (0) target = $region115
    $region114: #{_neumf_pallas.1} parent=1 // pred_region
      _
    $region115: #{_neumf_pallas.1} parent=1 // pred_fallthru
      _
    %1219 = vsyncpa [#allocation9], 1
  %1220 = vsyncmov [#allocation4]
  %s1221 = vpop.sfrf %1220
  %p1222 = scmp.eq.s32.totalorder %s1221, 0
  %p1223 = pneg %p1222
  %1225 = shalt.err (%p1223)
  %s1226 = scalar_lea.sflag [#allocation4], 1
  %1227 = vsyncmov %s1226
  %s1228 = vpop.sfrf %1227
  %p1229 = scmp.eq.s32.totalorder %s1228, 0
  %p1230 = pneg %p1229
  %1232 = shalt.err (%p1230)

</llo_original>
